<compile_context>
chip_gen: v7x
topology: tpu7x:2x2x1
jax: 0.10.0
libtpu: 0.0.40
codegen_flags: <defaults>
</compile_context>

<pallas_src>
import functools

import jax
import jax.numpy as jnp
from jax.experimental import pallas as pl
from jax.experimental.pallas import tpu as pltpu


def _make_block_kernel(H, W, P, Cp, k, d, eps, col_dtype):
  pad = (k // 2) * d

  def im2col_into(col_ref, src, mask_ref):
    """Write the (k*k*Cp, P) im2col of the (Cp, P) activation `src`.

    Tap (ky, kx) of output pixel p needs src[:, p + f] with f = dy*W + dx,
    zeroed whenever the tap leaves the HxW image.  Every position where the
    circular lane-roll wraps (cross-row, cross-image, cross-batch) is provably
    out-of-image, so the precomputed in-image mask also kills wrap bleed.
    Each tap = 1 XLU roll + 1 VPU mask-mul (f32) + 1 unmasked full-tile bf16
    store into a packed-sublane-aligned Cp-row block.
    """
    for ky in range(k):
      for kx in range(k):
        t = ky * k + kx
        f = (ky * d - pad) * W + (kx * d - pad)   # flat pixel shift of this tap
        r0 = t * Cp
        if f == 0:
          # centre tap: no shift, mask is all ones
          col_ref[r0:r0 + Cp, :] = src.astype(col_dtype)
        else:
          # rolled[:, p] == src[:, (p + f) % P]
          rolled = pltpu.roll(src, shift=(-f) % P, axis=1)
          col_ref[r0:r0 + Cp, :] = (rolled * mask_ref[t:t + 1, :]).astype(col_dtype)

  def batchnorm(acc, g, be):
    # One-pass batch statistics (var = E[x^2] - m^2) plus a single fused
    # per-element scale+shift: halves the cross-lane reduction work and drops
    # the extra (Cp, P) subtract of the two-pass form.  Padded channels have
    # acc == 0 and gamma == beta == 0, so they stay exactly zero.
    m = jnp.mean(acc, axis=1, keepdims=True)
    ex2 = jnp.mean(acc * acc, axis=1, keepdims=True)
    var = ex2 - m * m
    scale = g * jax.lax.rsqrt(var + eps)
    shift = be - m * scale
    return acc * scale + shift

  def kernel(x_ref, w1_ref, w2_ref, mask_ref,
             g1_ref, be1_ref, g2_ref, be2_ref, o_ref, col_ref):
    x = x_ref[...]                                        # (Cp, P) f32, lane-dense

    # ---- conv1: one fused MXU matmul (Cp, k*k*Cp) @ (k*k*Cp, P), bf16 in / f32 acc
    im2col_into(col_ref, x, mask_ref)
    acc1 = jnp.dot(w1_ref[...], col_ref[...],
                   preferred_element_type=jnp.float32)

    # ---- bn1 (training-mode batch statistics) + ReLU, f32 VPU work ---------
    h1 = jnp.maximum(batchnorm(acc1, g1_ref[...], be1_ref[...]), 0.0)

    # ---- conv2: rebuild im2col from h1 (same scratch) + one fused matmul ---
    im2col_into(col_ref, h1, mask_ref)
    acc2 = jnp.dot(w2_ref[...], col_ref[...],
                   preferred_element_type=jnp.float32)

    # ---- bn2 + residual + ReLU; unmasked lane-dense (Cp, P) store ----------
    h2 = batchnorm(acc2, g2_ref[...], be2_ref[...])
    o_ref[...] = jnp.maximum(h2 + x, 0.0)

  return kernel


@functools.partial(jax.jit, static_argnames=("k", "s", "d"))
def block_forward(x_nchw, params, *, k, s=1, d=1):
  """Pallas forward for Block. x_nchw: (N, Ci, H, W) float32, returns NCHW."""
  if s != 1:
    raise NotImplementedError("residual add requires stride 1")
  eps = 1e-5
  N, Ci, H, W = x_nchw.shape
  Co = params["w1"].shape[0]
  if Co != Ci:
    raise ValueError("residual add requires matching in/out channels")
  C = Ci
  pad = (k // 2) * d
  P = N * H * W

  # MXU operands in bf16 (native on v5e/v6e/v7x); accumulation stays f32.
  mxu_dtype = jnp.bfloat16
  # Channel padding: round up to a full packed sublane-tile group for the
  # scratch dtype (8 rows * 32/16-bit packing = 16 for bf16) so every im2col
  # tap store is a full, unmasked packed tile and adjacent taps never share
  # a tile.  The padded rows are exactly zero end-to-end (zero weights, zero
  # gamma/beta), so they are sliced off after the call.
  pack = 8 * (4 // jnp.dtype(mxu_dtype).itemsize)
  Cp = ((C + pack - 1) // pack) * pack
  KKp = k * k * Cp

  # Channel-major, lane-dense activation layout (Cp, N*H*W), zero-padded rows.
  # TODO(synk): at realistic sizes accept/return channel-major (or fold the
  # relayout into a BlockSpec index_map) to avoid these extra HBM passes.
  x_cp = jnp.transpose(x_nchw, (1, 0, 2, 3)).reshape(C, P)
  x_p = jnp.zeros((Cp, P), jnp.float32).at[:C].set(x_cp)

  # Per-tap boundary masks: 1 where the shifted tap stays inside the HxW
  # image.  Every lane-roll wrap position is out-of-image, so this mask also
  # zeroes all wrap/halo columns — no in-kernel halo fills needed.
  pidx = jnp.arange(P, dtype=jnp.int32)
  yy = (pidx // W) % H
  xx = pidx % W
  rows = []
  for ky in range(k):
    for kx in range(k):
      dy = ky * d - pad
      dx = kx * d - pad
      valid = ((yy + dy >= 0) & (yy + dy < H) &
               (xx + dx >= 0) & (xx + dx < W))
      rows.append(valid.astype(jnp.float32))
  mask = jnp.stack(rows, axis=0)                           # (k*k, P) f32

  # Conv weights (O, I, k, k) -> (Cp, k*k*Cp) bf16, tap-major / channel-minor,
  # zero-padded in both channel dims to match the padded im2col row order.
  # Conv biases are intentionally dropped: a per-channel constant before
  # training-mode BN is cancelled exactly by the mean subtraction.
  def to_col(w):
    wp = jnp.zeros((Cp, k, k, Cp), jnp.float32).at[:C, :, :, :C].set(
        jnp.transpose(w, (0, 2, 3, 1)))
    return wp.reshape(Cp, KKp).astype(mxu_dtype)

  w1col = to_col(params["w1"])
  w2col = to_col(params["w2"])

  def pad_vec(v):
    return jnp.zeros((Cp, 1), jnp.float32).at[:C, 0].set(v)

  g1 = pad_vec(params["g1"])
  be1 = pad_vec(params["be1"])
  g2 = pad_vec(params["g2"])
  be2 = pad_vec(params["be2"])

  kernel = _make_block_kernel(H, W, P, Cp, k, d, eps, mxu_dtype)
  vmem = pl.BlockSpec(memory_space=pltpu.MemorySpace.VMEM)

  flops = 2 * (2 * Cp * KKp * P) + 2 * (k * k) * Cp * P + 32 * Cp * P
  bytes_accessed = 4 * (2 * Cp * P + k * k * P + 4 * Cp) + 2 * (2 * Cp * KKp)
  cost = pl.CostEstimate(flops=int(flops), transcendentals=int(2 * Cp),
                         bytes_accessed=int(bytes_accessed))

  out_cp = pl.pallas_call(
      kernel,
      out_shape=jax.ShapeDtypeStruct((Cp, P), jnp.float32),
      in_specs=[vmem] * 8,
      out_specs=vmem,
      scratch_shapes=[pltpu.VMEM((KKp, P), mxu_dtype)],
      compiler_params=pltpu.CompilerParams(vmem_limit_bytes=32 * 1024 * 1024),
      cost_estimate=cost,
  )(x_p, w1col, w2col, mask, g1, be1, g2, be2)

  # TODO(synk): at realistic shapes (e.g. C>=64, P~25k) add a P-tile grid with
  # dimension_semantics=("parallel", ...) and two-pass BN partial sums so the
  # second TensorCore on v7x is used and the (k*k*Cp, P) scratch stays under
  # v7x's 64 MiB VMEM; once C >= 128, drop the explicit im2col and accumulate
  # k*k matmuls against rolled, masked (C, P) activations instead.  At this
  # ~8 KiB problem size a single VMEM-resident invocation is the right regime.
  out = out_cp[:C].reshape(C, N, H, W)
  return jnp.transpose(out, (1, 0, 2, 3))


def reference_forward(x, params, *, k, s=1, d=1):
  """Pure-JAX f32 reference (NCHW), mirrors the PyTorch training-mode forward."""
  eps = 1e-5
  p = k // 2 * d

  def conv(h, w, b):
    y = jax.lax.conv_general_dilated(
        h, w, (s, s), [(p, p), (p, p)], rhs_dilation=(d, d),
        dimension_numbers=("NCHW", "OIHW", "NCHW"))
    return y + b[None, :, None, None]

  def bn(h, g, be):
    m = jnp.mean(h, axis=(0, 2, 3), keepdims=True)
    v = jnp.mean((h - m) ** 2, axis=(0, 2, 3), keepdims=True)
    return (h - m) * jax.lax.rsqrt(v + eps) * g[None, :, None, None] + be[None, :, None, None]

  out = jnp.maximum(bn(conv(x, params["w1"], params["b1"]), params["g1"], params["be1"]), 0.0)
  out = bn(conv(out, params["w2"], params["b2"]), params["g2"], params["be2"])
  return jnp.maximum(out + x, 0.0)


if __name__ == "__main__":
  # Block(i=4, o=4, k=3, s=1, d=1) on input (2, 4, 16, 16)
  i, o, k, s, d = 4, 4, 3, 1, 1
  N, H, W = 2, 16, 16

  key = jax.random.PRNGKey(0)
  kx, k1, k2, k3, k4 = jax.random.split(key, 5)

  x = jax.random.normal(kx, (N, i, H, W), jnp.float32)

  params = {
      # conv weights / biases (deterministic synthetic init)
      "w1": 0.1 * jax.random.normal(k1, (o, i, k, k), jnp.float32),
      "b1": 0.1 * jax.random.normal(k2, (o,), jnp.float32),
      "w2": 0.1 * jax.random.normal(k3, (o, o, k, k), jnp.float32),
      "b2": 0.1 * jax.random.normal(k4, (o,), jnp.float32),
      # BatchNorm affine params: PyTorch default init (gamma=1, beta=0)
      "g1": jnp.ones((o,), jnp.float32),
      "be1": jnp.zeros((o,), jnp.float32),
      "g2": jnp.ones((o,), jnp.float32),
      "be2": jnp.zeros((o,), jnp.float32),
  }
  # TODO(synk): BatchNorm running-stat (running_mean/var, momentum) updates are
  # stateful training bookkeeping and are not reproduced; the training-mode
  # forward output does not depend on them.

  out = block_forward(x, params, k=k, s=s, d=d)
  out = jax.block_until_ready(out)

  ref = reference_forward(x, params, k=k, s=s, d=d)
  max_err = float(jnp.max(jnp.abs(out - ref)))
  # Tolerance re-validated for bf16 MXU operands with f32 accumulation (per
  # review): two bf16 convs + BN normalization give a few-e-3 typical / ~1e-2
  # worst-case abs error vs the pure-f32 reference; any structural bug (wrong
  # tap shift, mask, or stats) produces O(1) error and still fails this check.
  if max_err > 5e-2:
    raise AssertionError(f"Pallas output mismatch vs reference, max abs err = {max_err}")

  print("KERNEL_OK")
</pallas_src>

<mosaic_0001>
module attributes {stable_mosaic.version = 11 : i64} {
  func.func @kernel(%arg0: memref<16x512xf32, #tpu.memory_space<vmem>>, %arg1: memref<16x144xbf16, #tpu.memory_space<vmem>>, %arg2: memref<16x144xbf16, #tpu.memory_space<vmem>>, %arg3: memref<9x512xf32, #tpu.memory_space<vmem>>, %arg4: memref<16x1xf32, #tpu.memory_space<vmem>>, %arg5: memref<16x1xf32, #tpu.memory_space<vmem>>, %arg6: memref<16x1xf32, #tpu.memory_space<vmem>>, %arg7: memref<16x1xf32, #tpu.memory_space<vmem>>, %arg8: memref<16x512xf32, #tpu.memory_space<vmem>>, %arg9: memref<144x512xbf16, #tpu.memory_space<vmem>>) attributes {dimension_semantics = [], scalar_prefetch = 0 : i64, scratch_operands = 1 : i64, tpu.core_type = #tpu.core_type<tc>} {
    %c0 = arith.constant 0 : index
    %c0_0 = arith.constant 0 : index
    %0 = vector.load %arg0[%c0, %c0_0] : memref<16x512xf32, #tpu.memory_space<vmem>>, vector<16x512xf32>
    %c17_i32 = arith.constant 17 : i32
    %1 = tpu.dynamic_rotate %0 by %c17_i32 dim 1 : vector<16x512xf32>, i32 -> vector<16x512xf32>
    %c0_1 = arith.constant 0 : index
    %c0_2 = arith.constant 0 : index
    %2 = vector.load %arg3[%c0_1, %c0_2] : memref<9x512xf32, #tpu.memory_space<vmem>>, vector<1x512xf32>
    %3 = vector.broadcast %2 : vector<1x512xf32> to vector<16x512xf32>
    %4 = arith.mulf %1, %3 : vector<16x512xf32>
    %5 = arith.truncf %4 : vector<16x512xf32> to vector<16x512xbf16>
    %c0_3 = arith.constant 0 : index
    %c0_4 = arith.constant 0 : index
    %6 = vector.load %arg9[%c0_3, %c0_4] : memref<144x512xbf16, #tpu.memory_space<vmem>>, vector<16x512xbf16>
    tpu.vector_store %arg9[%c0_3, %c0_4], %5 {strides = array<i32>} : memref<144x512xbf16, #tpu.memory_space<vmem>>, vector<16x512xbf16>,
    %c16_i32 = arith.constant 16 : i32
    %7 = tpu.dynamic_rotate %0 by %c16_i32 dim 1 : vector<16x512xf32>, i32 -> vector<16x512xf32>
    %c1 = arith.constant 1 : index
    %c0_5 = arith.constant 0 : index
    %8 = vector.load %arg3[%c1, %c0_5] : memref<9x512xf32, #tpu.memory_space<vmem>>, vector<1x512xf32>
    %9 = vector.broadcast %8 : vector<1x512xf32> to vector<16x512xf32>
    %10 = arith.mulf %7, %9 : vector<16x512xf32>
    %11 = arith.truncf %10 : vector<16x512xf32> to vector<16x512xbf16>
    %c16 = arith.constant 16 : index
    %c0_6 = arith.constant 0 : index
    %12 = vector.load %arg9[%c16, %c0_6] : memref<144x512xbf16, #tpu.memory_space<vmem>>, vector<16x512xbf16>
    tpu.vector_store %arg9[%c16, %c0_6], %11 {strides = array<i32>} : memref<144x512xbf16, #tpu.memory_space<vmem>>, vector<16x512xbf16>,
    %c15_i32 = arith.constant 15 : i32
    %13 = tpu.dynamic_rotate %0 by %c15_i32 dim 1 : vector<16x512xf32>, i32 -> vector<16x512xf32>
    %c2 = arith.constant 2 : index
    %c0_7 = arith.constant 0 : index
    %14 = vector.load %arg3[%c2, %c0_7] : memref<9x512xf32, #tpu.memory_space<vmem>>, vector<1x512xf32>
    %15 = vector.broadcast %14 : vector<1x512xf32> to vector<16x512xf32>
    %16 = arith.mulf %13, %15 : vector<16x512xf32>
    %17 = arith.truncf %16 : vector<16x512xf32> to vector<16x512xbf16>
    %c32 = arith.constant 32 : index
    %c0_8 = arith.constant 0 : index
    %18 = vector.load %arg9[%c32, %c0_8] : memref<144x512xbf16, #tpu.memory_space<vmem>>, vector<16x512xbf16>
    tpu.vector_store %arg9[%c32, %c0_8], %17 {strides = array<i32>} : memref<144x512xbf16, #tpu.memory_space<vmem>>, vector<16x512xbf16>,
    %c1_i32 = arith.constant 1 : i32
    %19 = tpu.dynamic_rotate %0 by %c1_i32 dim 1 : vector<16x512xf32>, i32 -> vector<16x512xf32>
    %c3 = arith.constant 3 : index
    %c0_9 = arith.constant 0 : index
    %20 = vector.load %arg3[%c3, %c0_9] : memref<9x512xf32, #tpu.memory_space<vmem>>, vector<1x512xf32>
    %21 = vector.broadcast %20 : vector<1x512xf32> to vector<16x512xf32>
    %22 = arith.mulf %19, %21 : vector<16x512xf32>
    %23 = arith.truncf %22 : vector<16x512xf32> to vector<16x512xbf16>
    %c48 = arith.constant 48 : index
    %c0_10 = arith.constant 0 : index
    %24 = vector.load %arg9[%c48, %c0_10] : memref<144x512xbf16, #tpu.memory_space<vmem>>, vector<16x512xbf16>
    tpu.vector_store %arg9[%c48, %c0_10], %23 {strides = array<i32>} : memref<144x512xbf16, #tpu.memory_space<vmem>>, vector<16x512xbf16>,
    %25 = arith.truncf %0 : vector<16x512xf32> to vector<16x512xbf16>
    %c64 = arith.constant 64 : index
    %c0_11 = arith.constant 0 : index
    %26 = vector.load %arg9[%c64, %c0_11] : memref<144x512xbf16, #tpu.memory_space<vmem>>, vector<16x512xbf16>
    tpu.vector_store %arg9[%c64, %c0_11], %25 {strides = array<i32>} : memref<144x512xbf16, #tpu.memory_space<vmem>>, vector<16x512xbf16>,
    %c511_i32 = arith.constant 511 : i32
    %27 = tpu.dynamic_rotate %0 by %c511_i32 dim 1 : vector<16x512xf32>, i32 -> vector<16x512xf32>
    %c5 = arith.constant 5 : index
    %c0_12 = arith.constant 0 : index
    %28 = vector.load %arg3[%c5, %c0_12] : memref<9x512xf32, #tpu.memory_space<vmem>>, vector<1x512xf32>
    %29 = vector.broadcast %28 : vector<1x512xf32> to vector<16x512xf32>
    %30 = arith.mulf %27, %29 : vector<16x512xf32>
    %31 = arith.truncf %30 : vector<16x512xf32> to vector<16x512xbf16>
    %c80 = arith.constant 80 : index
    %c0_13 = arith.constant 0 : index
    %32 = vector.load %arg9[%c80, %c0_13] : memref<144x512xbf16, #tpu.memory_space<vmem>>, vector<16x512xbf16>
    tpu.vector_store %arg9[%c80, %c0_13], %31 {strides = array<i32>} : memref<144x512xbf16, #tpu.memory_space<vmem>>, vector<16x512xbf16>,
    %c497_i32 = arith.constant 497 : i32
    %33 = tpu.dynamic_rotate %0 by %c497_i32 dim 1 : vector<16x512xf32>, i32 -> vector<16x512xf32>
    %c6 = arith.constant 6 : index
    %c0_14 = arith.constant 0 : index
    %34 = vector.load %arg3[%c6, %c0_14] : memref<9x512xf32, #tpu.memory_space<vmem>>, vector<1x512xf32>
    %35 = vector.broadcast %34 : vector<1x512xf32> to vector<16x512xf32>
    %36 = arith.mulf %33, %35 : vector<16x512xf32>
    %37 = arith.truncf %36 : vector<16x512xf32> to vector<16x512xbf16>
    %c96 = arith.constant 96 : index
    %c0_15 = arith.constant 0 : index
    %38 = vector.load %arg9[%c96, %c0_15] : memref<144x512xbf16, #tpu.memory_space<vmem>>, vector<16x512xbf16>
    tpu.vector_store %arg9[%c96, %c0_15], %37 {strides = array<i32>} : memref<144x512xbf16, #tpu.memory_space<vmem>>, vector<16x512xbf16>,
    %c496_i32 = arith.constant 496 : i32
    %39 = tpu.dynamic_rotate %0 by %c496_i32 dim 1 : vector<16x512xf32>, i32 -> vector<16x512xf32>
    %c7 = arith.constant 7 : index
    %c0_16 = arith.constant 0 : index
    %40 = vector.load %arg3[%c7, %c0_16] : memref<9x512xf32, #tpu.memory_space<vmem>>, vector<1x512xf32>
    %41 = vector.broadcast %40 : vector<1x512xf32> to vector<16x512xf32>
    %42 = arith.mulf %39, %41 : vector<16x512xf32>
    %43 = arith.truncf %42 : vector<16x512xf32> to vector<16x512xbf16>
    %c112 = arith.constant 112 : index
    %c0_17 = arith.constant 0 : index
    %44 = vector.load %arg9[%c112, %c0_17] : memref<144x512xbf16, #tpu.memory_space<vmem>>, vector<16x512xbf16>
    tpu.vector_store %arg9[%c112, %c0_17], %43 {strides = array<i32>} : memref<144x512xbf16, #tpu.memory_space<vmem>>, vector<16x512xbf16>,
    %c495_i32 = arith.constant 495 : i32
    %45 = tpu.dynamic_rotate %0 by %c495_i32 dim 1 : vector<16x512xf32>, i32 -> vector<16x512xf32>
    %c8 = arith.constant 8 : index
    %c0_18 = arith.constant 0 : index
    %46 = vector.load %arg3[%c8, %c0_18] : memref<9x512xf32, #tpu.memory_space<vmem>>, vector<1x512xf32>
    %47 = vector.broadcast %46 : vector<1x512xf32> to vector<16x512xf32>
    %48 = arith.mulf %45, %47 : vector<16x512xf32>
    %49 = arith.truncf %48 : vector<16x512xf32> to vector<16x512xbf16>
    %c128 = arith.constant 128 : index
    %c0_19 = arith.constant 0 : index
    %50 = vector.load %arg9[%c128, %c0_19] : memref<144x512xbf16, #tpu.memory_space<vmem>>, vector<16x512xbf16>
    tpu.vector_store %arg9[%c128, %c0_19], %49 {strides = array<i32>} : memref<144x512xbf16, #tpu.memory_space<vmem>>, vector<16x512xbf16>,
    %c0_20 = arith.constant 0 : index
    %c0_21 = arith.constant 0 : index
    %51 = vector.load %arg1[%c0_20, %c0_21] : memref<16x144xbf16, #tpu.memory_space<vmem>>, vector<16x144xbf16>
    %c0_22 = arith.constant 0 : index
    %c0_23 = arith.constant 0 : index
    %52 = vector.load %arg9[%c0_22, %c0_23] : memref<144x512xbf16, #tpu.memory_space<vmem>>, vector<144x512xbf16>
    %cst = arith.constant dense<0.000000e+00> : vector<16x512xf32>
    %53 = tpu.matmul %51, %52, %cst {dimension_numbers = #tpu.dot_dimension_numbers<[1], [0], [0], [1], [0, 0, 1, 1], [], []>} : vector<16x144xbf16>, vector<144x512xbf16>, vector<16x512xf32> -> vector<16x512xf32>
    %c0_24 = arith.constant 0 : index
    %c0_25 = arith.constant 0 : index
    %54 = vector.load %arg4[%c0_24, %c0_25] : memref<16x1xf32, #tpu.memory_space<vmem>>, vector<16x1xf32>
    %c0_26 = arith.constant 0 : index
    %c0_27 = arith.constant 0 : index
    %55 = vector.load %arg5[%c0_26, %c0_27] : memref<16x1xf32, #tpu.memory_space<vmem>>, vector<16x1xf32>
    %cst_28 = arith.constant dense<0.000000e+00> : vector<16xf32>
    %56 = vector.multi_reduction <add>, %53, %cst_28 [1] : vector<16x512xf32> to vector<16xf32>
    %57 = vector.shape_cast %56 : vector<16xf32> to vector<16x1xf32>
    %cst_29 = arith.constant 5.120000e+02 : f32
    %58 = vector.broadcast %cst_29 : f32 to vector<16x1xf32>
    %59 = arith.divf %57, %58 : vector<16x1xf32>
    %60 = arith.mulf %53, %53 : vector<16x512xf32>
    %cst_30 = arith.constant dense<0.000000e+00> : vector<16xf32>
    %61 = vector.multi_reduction <add>, %60, %cst_30 [1] : vector<16x512xf32> to vector<16xf32>
    %62 = vector.shape_cast %61 : vector<16xf32> to vector<16x1xf32>
    %cst_31 = arith.constant 5.120000e+02 : f32
    %63 = vector.broadcast %cst_31 : f32 to vector<16x1xf32>
    %64 = arith.divf %62, %63 : vector<16x1xf32>
    %65 = arith.mulf %59, %59 : vector<16x1xf32>
    %66 = arith.subf %64, %65 : vector<16x1xf32>
    %cst_32 = arith.constant 9.99999974E-6 : f32
    %67 = vector.broadcast %cst_32 : f32 to vector<16x1xf32>
    %68 = arith.addf %66, %67 : vector<16x1xf32>
    %69 = math.rsqrt %68 : vector<16x1xf32>
    %70 = arith.mulf %54, %69 : vector<16x1xf32>
    %71 = arith.mulf %59, %70 : vector<16x1xf32>
    %72 = arith.subf %55, %71 : vector<16x1xf32>
    %73 = vector.broadcast %70 : vector<16x1xf32> to vector<16x512xf32>
    %74 = arith.mulf %53, %73 : vector<16x512xf32>
    %75 = vector.broadcast %72 : vector<16x1xf32> to vector<16x512xf32>
    %76 = arith.addf %74, %75 : vector<16x512xf32>
    %cst_33 = arith.constant 0.000000e+00 : f32
    %77 = vector.broadcast %cst_33 : f32 to vector<16x512xf32>
    %78 = arith.maximumf %76, %77 : vector<16x512xf32>
    %c17_i32_34 = arith.constant 17 : i32
    %79 = tpu.dynamic_rotate %78 by %c17_i32_34 dim 1 : vector<16x512xf32>, i32 -> vector<16x512xf32>
    %c0_35 = arith.constant 0 : index
    %c0_36 = arith.constant 0 : index
    %80 = vector.load %arg3[%c0_35, %c0_36] : memref<9x512xf32, #tpu.memory_space<vmem>>, vector<1x512xf32>
    %81 = vector.broadcast %80 : vector<1x512xf32> to vector<16x512xf32>
    %82 = arith.mulf %79, %81 : vector<16x512xf32>
    %83 = arith.truncf %82 : vector<16x512xf32> to vector<16x512xbf16>
    %c0_37 = arith.constant 0 : index
    %c0_38 = arith.constant 0 : index
    %84 = vector.load %arg9[%c0_37, %c0_38] : memref<144x512xbf16, #tpu.memory_space<vmem>>, vector<16x512xbf16>
    tpu.vector_store %arg9[%c0_37, %c0_38], %83 {strides = array<i32>} : memref<144x512xbf16, #tpu.memory_space<vmem>>, vector<16x512xbf16>,
    %c16_i32_39 = arith.constant 16 : i32
    %85 = tpu.dynamic_rotate %78 by %c16_i32_39 dim 1 : vector<16x512xf32>, i32 -> vector<16x512xf32>
    %c1_40 = arith.constant 1 : index
    %c0_41 = arith.constant 0 : index
    %86 = vector.load %arg3[%c1_40, %c0_41] : memref<9x512xf32, #tpu.memory_space<vmem>>, vector<1x512xf32>
    %87 = vector.broadcast %86 : vector<1x512xf32> to vector<16x512xf32>
    %88 = arith.mulf %85, %87 : vector<16x512xf32>
    %89 = arith.truncf %88 : vector<16x512xf32> to vector<16x512xbf16>
    %c16_42 = arith.constant 16 : index
    %c0_43 = arith.constant 0 : index
    %90 = vector.load %arg9[%c16_42, %c0_43] : memref<144x512xbf16, #tpu.memory_space<vmem>>, vector<16x512xbf16>
    tpu.vector_store %arg9[%c16_42, %c0_43], %89 {strides = array<i32>} : memref<144x512xbf16, #tpu.memory_space<vmem>>, vector<16x512xbf16>,
    %c15_i32_44 = arith.constant 15 : i32
    %91 = tpu.dynamic_rotate %78 by %c15_i32_44 dim 1 : vector<16x512xf32>, i32 -> vector<16x512xf32>
    %c2_45 = arith.constant 2 : index
    %c0_46 = arith.constant 0 : index
    %92 = vector.load %arg3[%c2_45, %c0_46] : memref<9x512xf32, #tpu.memory_space<vmem>>, vector<1x512xf32>
    %93 = vector.broadcast %92 : vector<1x512xf32> to vector<16x512xf32>
    %94 = arith.mulf %91, %93 : vector<16x512xf32>
    %95 = arith.truncf %94 : vector<16x512xf32> to vector<16x512xbf16>
    %c32_47 = arith.constant 32 : index
    %c0_48 = arith.constant 0 : index
    %96 = vector.load %arg9[%c32_47, %c0_48] : memref<144x512xbf16, #tpu.memory_space<vmem>>, vector<16x512xbf16>
    tpu.vector_store %arg9[%c32_47, %c0_48], %95 {strides = array<i32>} : memref<144x512xbf16, #tpu.memory_space<vmem>>, vector<16x512xbf16>,
    %c1_i32_49 = arith.constant 1 : i32
    %97 = tpu.dynamic_rotate %78 by %c1_i32_49 dim 1 : vector<16x512xf32>, i32 -> vector<16x512xf32>
    %c3_50 = arith.constant 3 : index
    %c0_51 = arith.constant 0 : index
    %98 = vector.load %arg3[%c3_50, %c0_51] : memref<9x512xf32, #tpu.memory_space<vmem>>, vector<1x512xf32>
    %99 = vector.broadcast %98 : vector<1x512xf32> to vector<16x512xf32>
    %100 = arith.mulf %97, %99 : vector<16x512xf32>
    %101 = arith.truncf %100 : vector<16x512xf32> to vector<16x512xbf16>
    %c48_52 = arith.constant 48 : index
    %c0_53 = arith.constant 0 : index
    %102 = vector.load %arg9[%c48_52, %c0_53] : memref<144x512xbf16, #tpu.memory_space<vmem>>, vector<16x512xbf16>
    tpu.vector_store %arg9[%c48_52, %c0_53], %101 {strides = array<i32>} : memref<144x512xbf16, #tpu.memory_space<vmem>>, vector<16x512xbf16>,
    %103 = arith.truncf %78 : vector<16x512xf32> to vector<16x512xbf16>
    %c64_54 = arith.constant 64 : index
    %c0_55 = arith.constant 0 : index
    %104 = vector.load %arg9[%c64_54, %c0_55] : memref<144x512xbf16, #tpu.memory_space<vmem>>, vector<16x512xbf16>
    tpu.vector_store %arg9[%c64_54, %c0_55], %103 {strides = array<i32>} : memref<144x512xbf16, #tpu.memory_space<vmem>>, vector<16x512xbf16>,
    %c511_i32_56 = arith.constant 511 : i32
    %105 = tpu.dynamic_rotate %78 by %c511_i32_56 dim 1 : vector<16x512xf32>, i32 -> vector<16x512xf32>
    %c5_57 = arith.constant 5 : index
    %c0_58 = arith.constant 0 : index
    %106 = vector.load %arg3[%c5_57, %c0_58] : memref<9x512xf32, #tpu.memory_space<vmem>>, vector<1x512xf32>
    %107 = vector.broadcast %106 : vector<1x512xf32> to vector<16x512xf32>
    %108 = arith.mulf %105, %107 : vector<16x512xf32>
    %109 = arith.truncf %108 : vector<16x512xf32> to vector<16x512xbf16>
    %c80_59 = arith.constant 80 : index
    %c0_60 = arith.constant 0 : index
    %110 = vector.load %arg9[%c80_59, %c0_60] : memref<144x512xbf16, #tpu.memory_space<vmem>>, vector<16x512xbf16>
    tpu.vector_store %arg9[%c80_59, %c0_60], %109 {strides = array<i32>} : memref<144x512xbf16, #tpu.memory_space<vmem>>, vector<16x512xbf16>,
    %c497_i32_61 = arith.constant 497 : i32
    %111 = tpu.dynamic_rotate %78 by %c497_i32_61 dim 1 : vector<16x512xf32>, i32 -> vector<16x512xf32>
    %c6_62 = arith.constant 6 : index
    %c0_63 = arith.constant 0 : index
    %112 = vector.load %arg3[%c6_62, %c0_63] : memref<9x512xf32, #tpu.memory_space<vmem>>, vector<1x512xf32>
    %113 = vector.broadcast %112 : vector<1x512xf32> to vector<16x512xf32>
    %114 = arith.mulf %111, %113 : vector<16x512xf32>
    %115 = arith.truncf %114 : vector<16x512xf32> to vector<16x512xbf16>
    %c96_64 = arith.constant 96 : index
    %c0_65 = arith.constant 0 : index
    %116 = vector.load %arg9[%c96_64, %c0_65] : memref<144x512xbf16, #tpu.memory_space<vmem>>, vector<16x512xbf16>
    tpu.vector_store %arg9[%c96_64, %c0_65], %115 {strides = array<i32>} : memref<144x512xbf16, #tpu.memory_space<vmem>>, vector<16x512xbf16>,
    %c496_i32_66 = arith.constant 496 : i32
    %117 = tpu.dynamic_rotate %78 by %c496_i32_66 dim 1 : vector<16x512xf32>, i32 -> vector<16x512xf32>
    %c7_67 = arith.constant 7 : index
    %c0_68 = arith.constant 0 : index
    %118 = vector.load %arg3[%c7_67, %c0_68] : memref<9x512xf32, #tpu.memory_space<vmem>>, vector<1x512xf32>
    %119 = vector.broadcast %118 : vector<1x512xf32> to vector<16x512xf32>
    %120 = arith.mulf %117, %119 : vector<16x512xf32>
    %121 = arith.truncf %120 : vector<16x512xf32> to vector<16x512xbf16>
    %c112_69 = arith.constant 112 : index
    %c0_70 = arith.constant 0 : index
    %122 = vector.load %arg9[%c112_69, %c0_70] : memref<144x512xbf16, #tpu.memory_space<vmem>>, vector<16x512xbf16>
    tpu.vector_store %arg9[%c112_69, %c0_70], %121 {strides = array<i32>} : memref<144x512xbf16, #tpu.memory_space<vmem>>, vector<16x512xbf16>,
    %c495_i32_71 = arith.constant 495 : i32
    %123 = tpu.dynamic_rotate %78 by %c495_i32_71 dim 1 : vector<16x512xf32>, i32 -> vector<16x512xf32>
    %c8_72 = arith.constant 8 : index
    %c0_73 = arith.constant 0 : index
    %124 = vector.load %arg3[%c8_72, %c0_73] : memref<9x512xf32, #tpu.memory_space<vmem>>, vector<1x512xf32>
    %125 = vector.broadcast %124 : vector<1x512xf32> to vector<16x512xf32>
    %126 = arith.mulf %123, %125 : vector<16x512xf32>
    %127 = arith.truncf %126 : vector<16x512xf32> to vector<16x512xbf16>
    %c128_74 = arith.constant 128 : index
    %c0_75 = arith.constant 0 : index
    %128 = vector.load %arg9[%c128_74, %c0_75] : memref<144x512xbf16, #tpu.memory_space<vmem>>, vector<16x512xbf16>
    tpu.vector_store %arg9[%c128_74, %c0_75], %127 {strides = array<i32>} : memref<144x512xbf16, #tpu.memory_space<vmem>>, vector<16x512xbf16>,
    %c0_76 = arith.constant 0 : index
    %c0_77 = arith.constant 0 : index
    %129 = vector.load %arg2[%c0_76, %c0_77] : memref<16x144xbf16, #tpu.memory_space<vmem>>, vector<16x144xbf16>
    %c0_78 = arith.constant 0 : index
    %c0_79 = arith.constant 0 : index
    %130 = vector.load %arg9[%c0_78, %c0_79] : memref<144x512xbf16, #tpu.memory_space<vmem>>, vector<144x512xbf16>
    %cst_80 = arith.constant dense<0.000000e+00> : vector<16x512xf32>
    %131 = tpu.matmul %129, %130, %cst_80 {dimension_numbers = #tpu.dot_dimension_numbers<[1], [0], [0], [1], [0, 0, 1, 1], [], []>} : vector<16x144xbf16>, vector<144x512xbf16>, vector<16x512xf32> -> vector<16x512xf32>
    %c0_81 = arith.constant 0 : index
    %c0_82 = arith.constant 0 : index
    %132 = vector.load %arg6[%c0_81, %c0_82] : memref<16x1xf32, #tpu.memory_space<vmem>>, vector<16x1xf32>
    %c0_83 = arith.constant 0 : index
    %c0_84 = arith.constant 0 : index
    %133 = vector.load %arg7[%c0_83, %c0_84] : memref<16x1xf32, #tpu.memory_space<vmem>>, vector<16x1xf32>
    %cst_85 = arith.constant dense<0.000000e+00> : vector<16xf32>
    %134 = vector.multi_reduction <add>, %131, %cst_85 [1] : vector<16x512xf32> to vector<16xf32>
    %135 = vector.shape_cast %134 : vector<16xf32> to vector<16x1xf32>
    %cst_86 = arith.constant 5.120000e+02 : f32
    %136 = vector.broadcast %cst_86 : f32 to vector<16x1xf32>
    %137 = arith.divf %135, %136 : vector<16x1xf32>
    %138 = arith.mulf %131, %131 : vector<16x512xf32>
    %cst_87 = arith.constant dense<0.000000e+00> : vector<16xf32>
    %139 = vector.multi_reduction <add>, %138, %cst_87 [1] : vector<16x512xf32> to vector<16xf32>
    %140 = vector.shape_cast %139 : vector<16xf32> to vector<16x1xf32>
    %cst_88 = arith.constant 5.120000e+02 : f32
    %141 = vector.broadcast %cst_88 : f32 to vector<16x1xf32>
    %142 = arith.divf %140, %141 : vector<16x1xf32>
    %143 = arith.mulf %137, %137 : vector<16x1xf32>
    %144 = arith.subf %142, %143 : vector<16x1xf32>
    %cst_89 = arith.constant 9.99999974E-6 : f32
    %145 = vector.broadcast %cst_89 : f32 to vector<16x1xf32>
    %146 = arith.addf %144, %145 : vector<16x1xf32>
    %147 = math.rsqrt %146 : vector<16x1xf32>
    %148 = arith.mulf %132, %147 : vector<16x1xf32>
    %149 = arith.mulf %137, %148 : vector<16x1xf32>
    %150 = arith.subf %133, %149 : vector<16x1xf32>
    %151 = vector.broadcast %148 : vector<16x1xf32> to vector<16x512xf32>
    %152 = arith.mulf %131, %151 : vector<16x512xf32>
    %153 = vector.broadcast %150 : vector<16x1xf32> to vector<16x512xf32>
    %154 = arith.addf %152, %153 : vector<16x512xf32>
    %155 = arith.addf %154, %0 : vector<16x512xf32>
    %cst_90 = arith.constant 0.000000e+00 : f32
    %156 = vector.broadcast %cst_90 : f32 to vector<16x512xf32>
    %157 = arith.maximumf %155, %156 : vector<16x512xf32>
    %c0_91 = arith.constant 0 : index
    %c0_92 = arith.constant 0 : index
    %158 = vector.load %arg8[%c0_91, %c0_92] : memref<16x512xf32, #tpu.memory_space<vmem>>, vector<16x512xf32>
    tpu.vector_store %arg8[%c0_91, %c0_92], %157 {strides = array<i32>} : memref<16x512xf32, #tpu.memory_space<vmem>>, vector<16x512xf32>,
    return
  }
}

</mosaic_0001>

<llo_original>
// kernel: block_forward.1
$region0: #{block_forward.1}
  #allocation0 [shape = 'u32[]', space=smem, size = 0x4, offset = 0x4, fixed_abs, tag = 'smem constant byte address 0x4 - core index']
  #allocation1 [shape = 'u32[144,128]{1,0:T(1,128)}', space=vmem, size = 0x12000, scoped, tag = 'internal scratch']
  #allocation2 [shape = 'bf16[144,512]{1,0:T(16,128)(2,1)}', space=vmem, size = 0x24000, scoped, tag = 'scratch operand']
  %s0 = inlined_call_operand.vmem [shape: f32[16,512], index: 0, kind: input, shape index: {}]
  %s1 = inlined_call_operand.vmem [shape: bf16[16,144], index: 1, kind: input, shape index: {}]
  %s2 = inlined_call_operand.vmem [shape: bf16[16,144], index: 2, kind: input, shape index: {}]
  %s3 = inlined_call_operand.vmem [shape: f32[9,512], index: 3, kind: input, shape index: {}]
  %s4 = inlined_call_operand.vmem [shape: f32[16,1], index: 4, kind: input, shape index: {}]
  %s5 = inlined_call_operand.vmem [shape: f32[16,1], index: 5, kind: input, shape index: {}]
  %s6 = inlined_call_operand.vmem [shape: f32[16,1], index: 6, kind: input, shape index: {}]
  %s7 = inlined_call_operand.vmem [shape: f32[16,1], index: 7, kind: input, shape index: {}]
  %s8 = inlined_call_operand.vmem [shape: f32[16,512], index: 8, kind: output, shape index: {}]
  %s9 = sld [smem:[#allocation0]]
  $region42: #{block_forward.1} parent=0
    _
  %s11 = ssub.s32 1, %s9
  %s12 = scalar_select 0, %s11, %s9
  // Predicated region
  $region2: #{block_forward.1} parent=0 // pred_check
    _
  $region3: #{block_forward.1} parent=0 // pred_check_branch
    %14 = sbr.rel (0) target = $region5
  $region4: #{block_forward.1} parent=0 // pred_region
    _
  $region5: #{block_forward.1} parent=0 // pred_fallthru
    _
  // Predicated region
  $region6: #{block_forward.1} parent=0 // pred_check
    _
  $region7: #{block_forward.1} parent=0 // pred_check_branch
    %16 = sbr.rel (0) target = $region9
  $region8: #{block_forward.1} parent=0 // pred_region
    _
  $region9: #{block_forward.1} parent=0 // pred_fallthru
    _
  // Predicated region
  $region10: #{block_forward.1} parent=0 // pred_check
    _
  $region11: #{block_forward.1} parent=0 // pred_check_branch
    %18 = sbr.rel (0) target = $region13
  $region12: #{block_forward.1} parent=0 // pred_region
    _
  $region13: #{block_forward.1} parent=0 // pred_fallthru
    _
  // Predicated region
  $region14: #{block_forward.1} parent=0 // pred_check
    _
  $region15: #{block_forward.1} parent=0 // pred_check_branch
    %20 = sbr.rel (0) target = $region17
  $region16: #{block_forward.1} parent=0 // pred_region
    _
  $region17: #{block_forward.1} parent=0 // pred_fallthru
    _
  // Predicated region
  $region18: #{block_forward.1} parent=0 // pred_check
    _
  $region19: #{block_forward.1} parent=0 // pred_check_branch
    %22 = sbr.rel (0) target = $region21
  $region20: #{block_forward.1} parent=0 // pred_region
    _
  $region21: #{block_forward.1} parent=0 // pred_fallthru
    _
  // Predicated region
  $region22: #{block_forward.1} parent=0 // pred_check
    _
  $region23: #{block_forward.1} parent=0 // pred_check_branch
    %24 = sbr.rel (0) target = $region25
  $region24: #{block_forward.1} parent=0 // pred_region
    _
  $region25: #{block_forward.1} parent=0 // pred_fallthru
    _
  // Predicated region
  $region26: #{block_forward.1} parent=0 // pred_check
    _
  $region27: #{block_forward.1} parent=0 // pred_check_branch
    %26 = sbr.rel (0) target = $region29
  $region28: #{block_forward.1} parent=0 // pred_region
    _
  $region29: #{block_forward.1} parent=0 // pred_fallthru
    _
  // Predicated region
  $region30: #{block_forward.1} parent=0 // pred_check
    _
  $region31: #{block_forward.1} parent=0 // pred_check_branch
    %28 = sbr.rel (0) target = $region33
  $region32: #{block_forward.1} parent=0 // pred_region
    _
  $region33: #{block_forward.1} parent=0 // pred_fallthru
    _
  %v30 = vld [vmem:[%s0] sm:$0xff]
  %v31 = vld [vmem:[%s0 + $0x8] sm:$0xff]
  %v32 = vld [vmem:[%s0 + $0x10] sm:$0xff]
  %v33 = vld [vmem:[%s0 + $0x18] sm:$0xff]
  %v34 = vld [vmem:[%s0 + $0x20] sm:$0xff]
  %v35 = vld [vmem:[%s0 + $0x28] sm:$0xff]
  %v36 = vld [vmem:[%s0 + $0x30] sm:$0xff]
  %v37 = vld [vmem:[%s0 + $0x38] sm:$0xff]
  %38 = vrot.lane.b32.xlu0 %v30, 17
  %v39 = vpop.permute.xlu0 %38
  %40 = vrot.lane.b32.xlu0 %v34, 17
  %v41 = vpop.permute.xlu0 %40
  %42 = vrot.lane.b32.xlu0 %v31, 17
  %v43 = vpop.permute.xlu0 %42
  %44 = vrot.lane.b32.xlu0 %v35, 17
  %v45 = vpop.permute.xlu0 %44
  %46 = vrot.lane.b32.xlu0 %v32, 17
  %v47 = vpop.permute.xlu0 %46
  %48 = vrot.lane.b32.xlu0 %v36, 17
  %v49 = vpop.permute.xlu0 %48
  %50 = vrot.lane.b32.xlu0 %v33, 17
  %v51 = vpop.permute.xlu0 %50
  %52 = vrot.lane.b32.xlu0 %v37, 17
  %v53 = vpop.permute.xlu0 %52
  %v54 = vlaneseq
  %v55 = vand.u32 %v54, 127
  %vm56 = vcmp.lt.s32.totalorder %v55, 17
  %v57 = vsel %vm56, %v47, %v51
  %v58 = vsel %vm56, %v49, %v53
  %v59 = vsel %vm56, %v43, %v47
  %v60 = vsel %vm56, %v45, %v49
  %v61 = vsel %vm56, %v39, %v43
  %v62 = vsel %vm56, %v41, %v45
  %v63 = vsel %vm56, %v51, %v39
  %v64 = vsel %vm56, %v53, %v41
  %v65 = vld [vmem:[%s3] ss:$8 sm:$0xf]
  %v67 = vlaneseq
  %v68 = vshrl.u32 %v67, 7
  %v69 = vsub.s32 0, %v68
  %v70 = vrot.slane %v65, %v69
  %v71 = vlaneseq
  %v72 = vshrl.u32 %v71, 7
  %v73 = vsub.s32 1, %v72
  %v74 = vrot.slane %v65, %v73
  %v75 = vlaneseq
  %v76 = vshrl.u32 %v75, 7
  %v77 = vsub.s32 2, %v76
  %v78 = vrot.slane %v65, %v77
  %v79 = vlaneseq
  %v80 = vshrl.u32 %v79, 7
  %v81 = vsub.s32 3, %v80
  %v82 = vrot.slane %v65, %v81
  %v87 = vmul.f32 %v63, %v70
  %v88 = vmul.f32 %v61, %v74
  %v89 = vmul.f32 %v59, %v78
  %v90 = vmul.f32 %v57, %v82
  %v91 = vmul.f32 %v64, %v70
  %v92 = vmul.f32 %v62, %v74
  %v93 = vmul.f32 %v60, %v78
  %v94 = vmul.f32 %v58, %v82
  %v95 = vpack.c.bf16 %v91, %v87
  %v96 = vpack.c.bf16 %v92, %v88
  %v97 = vpack.c.bf16 %v93, %v89
  %v98 = vpack.c.bf16 %v94, %v90
  %99 = vst [vmem:[#allocation2] sm:$0xff] %v95
  %100 = vst [vmem:[#allocation2 + $0x8] sm:$0xff] %v96
  %101 = vst [vmem:[#allocation2 + $0x10] sm:$0xff] %v97
  %102 = vst [vmem:[#allocation2 + $0x18] sm:$0xff] %v98
  %103 = vrot.lane.b32.xlu0 %v30, 16
  %v104 = vpop.permute.xlu0 %103
  %105 = vrot.lane.b32.xlu0 %v34, 16
  %v106 = vpop.permute.xlu0 %105
  %107 = vrot.lane.b32.xlu0 %v31, 16
  %v108 = vpop.permute.xlu0 %107
  %109 = vrot.lane.b32.xlu0 %v35, 16
  %v110 = vpop.permute.xlu0 %109
  %111 = vrot.lane.b32.xlu0 %v32, 16
  %v112 = vpop.permute.xlu0 %111
  %113 = vrot.lane.b32.xlu0 %v36, 16
  %v114 = vpop.permute.xlu0 %113
  %115 = vrot.lane.b32.xlu0 %v33, 16
  %v116 = vpop.permute.xlu0 %115
  %117 = vrot.lane.b32.xlu0 %v37, 16
  %v118 = vpop.permute.xlu0 %117
  %vm119 = vcmp.lt.s32.totalorder %v55, 16
  %v120 = vsel %vm119, %v112, %v116
  %v121 = vsel %vm119, %v114, %v118
  %v122 = vsel %vm119, %v108, %v112
  %v123 = vsel %vm119, %v110, %v114
  %v124 = vsel %vm119, %v104, %v108
  %v125 = vsel %vm119, %v106, %v110
  %v126 = vsel %vm119, %v116, %v104
  %v127 = vsel %vm119, %v118, %v106
  %s128 = scalar_lea.vmem %s3, 1
  %v129 = vld [vmem:[%s128] ss:$8 sm:$0xf]
  %v131 = vlaneseq
  %v132 = vshrl.u32 %v131, 7
  %v133 = vsub.s32 0, %v132
  %v134 = vrot.slane %v129, %v133
  %v135 = vlaneseq
  %v136 = vshrl.u32 %v135, 7
  %v137 = vsub.s32 1, %v136
  %v138 = vrot.slane %v129, %v137
  %v139 = vlaneseq
  %v140 = vshrl.u32 %v139, 7
  %v141 = vsub.s32 2, %v140
  %v142 = vrot.slane %v129, %v141
  %v143 = vlaneseq
  %v144 = vshrl.u32 %v143, 7
  %v145 = vsub.s32 3, %v144
  %v146 = vrot.slane %v129, %v145
  %v151 = vmul.f32 %v126, %v134
  %v152 = vmul.f32 %v124, %v138
  %v153 = vmul.f32 %v122, %v142
  %v154 = vmul.f32 %v120, %v146
  %v155 = vmul.f32 %v127, %v134
  %v156 = vmul.f32 %v125, %v138
  %v157 = vmul.f32 %v123, %v142
  %v158 = vmul.f32 %v121, %v146
  %v159 = vpack.c.bf16 %v155, %v151
  %v160 = vpack.c.bf16 %v156, %v152
  %v161 = vpack.c.bf16 %v157, %v153
  %v162 = vpack.c.bf16 %v158, %v154
  %163 = vst [vmem:[#allocation2 + $0x20] sm:$0xff] %v159
  %164 = vst [vmem:[#allocation2 + $0x28] sm:$0xff] %v160
  %165 = vst [vmem:[#allocation2 + $0x30] sm:$0xff] %v161
  %166 = vst [vmem:[#allocation2 + $0x38] sm:$0xff] %v162
  %167 = vrot.lane.b32.xlu0 %v30, 15
  %v168 = vpop.permute.xlu0 %167
  %169 = vrot.lane.b32.xlu0 %v34, 15
  %v170 = vpop.permute.xlu0 %169
  %171 = vrot.lane.b32.xlu0 %v31, 15
  %v172 = vpop.permute.xlu0 %171
  %173 = vrot.lane.b32.xlu0 %v35, 15
  %v174 = vpop.permute.xlu0 %173
  %175 = vrot.lane.b32.xlu0 %v32, 15
  %v176 = vpop.permute.xlu0 %175
  %177 = vrot.lane.b32.xlu0 %v36, 15
  %v178 = vpop.permute.xlu0 %177
  %179 = vrot.lane.b32.xlu0 %v33, 15
  %v180 = vpop.permute.xlu0 %179
  %181 = vrot.lane.b32.xlu0 %v37, 15
  %v182 = vpop.permute.xlu0 %181
  %vm183 = vcmp.lt.s32.totalorder %v55, 15
  %v184 = vsel %vm183, %v176, %v180
  %v185 = vsel %vm183, %v178, %v182
  %v186 = vsel %vm183, %v172, %v176
  %v187 = vsel %vm183, %v174, %v178
  %v188 = vsel %vm183, %v168, %v172
  %v189 = vsel %vm183, %v170, %v174
  %v190 = vsel %vm183, %v180, %v168
  %v191 = vsel %vm183, %v182, %v170
  %s192 = scalar_lea.vmem %s3, 2
  %v193 = vld [vmem:[%s192] ss:$8 sm:$0xf]
  %v195 = vlaneseq
  %v196 = vshrl.u32 %v195, 7
  %v197 = vsub.s32 0, %v196
  %v198 = vrot.slane %v193, %v197
  %v199 = vlaneseq
  %v200 = vshrl.u32 %v199, 7
  %v201 = vsub.s32 1, %v200
  %v202 = vrot.slane %v193, %v201
  %v203 = vlaneseq
  %v204 = vshrl.u32 %v203, 7
  %v205 = vsub.s32 2, %v204
  %v206 = vrot.slane %v193, %v205
  %v207 = vlaneseq
  %v208 = vshrl.u32 %v207, 7
  %v209 = vsub.s32 3, %v208
  %v210 = vrot.slane %v193, %v209
  %v215 = vmul.f32 %v190, %v198
  %v216 = vmul.f32 %v188, %v202
  %v217 = vmul.f32 %v186, %v206
  %v218 = vmul.f32 %v184, %v210
  %v219 = vmul.f32 %v191, %v198
  %v220 = vmul.f32 %v189, %v202
  %v221 = vmul.f32 %v187, %v206
  %v222 = vmul.f32 %v185, %v210
  %v223 = vpack.c.bf16 %v219, %v215
  %v224 = vpack.c.bf16 %v220, %v216
  %v225 = vpack.c.bf16 %v221, %v217
  %v226 = vpack.c.bf16 %v222, %v218
  %227 = vst [vmem:[#allocation2 + $0x40] sm:$0xff] %v223
  %228 = vst [vmem:[#allocation2 + $0x48] sm:$0xff] %v224
  %229 = vst [vmem:[#allocation2 + $0x50] sm:$0xff] %v225
  %230 = vst [vmem:[#allocation2 + $0x58] sm:$0xff] %v226
  %231 = vrot.lane.b32.xlu0 %v30, 1
  %v232 = vpop.permute.xlu0 %231
  %233 = vrot.lane.b32.xlu0 %v34, 1
  %v234 = vpop.permute.xlu0 %233
  %235 = vrot.lane.b32.xlu0 %v31, 1
  %v236 = vpop.permute.xlu0 %235
  %237 = vrot.lane.b32.xlu0 %v35, 1
  %v238 = vpop.permute.xlu0 %237
  %239 = vrot.lane.b32.xlu0 %v32, 1
  %v240 = vpop.permute.xlu0 %239
  %241 = vrot.lane.b32.xlu0 %v36, 1
  %v242 = vpop.permute.xlu0 %241
  %243 = vrot.lane.b32.xlu0 %v33, 1
  %v244 = vpop.permute.xlu0 %243
  %245 = vrot.lane.b32.xlu0 %v37, 1
  %v246 = vpop.permute.xlu0 %245
  %vm247 = vcmp.lt.s32.totalorder %v55, 1
  %v248 = vsel %vm247, %v240, %v244
  %v249 = vsel %vm247, %v242, %v246
  %v250 = vsel %vm247, %v236, %v240
  %v251 = vsel %vm247, %v238, %v242
  %v252 = vsel %vm247, %v232, %v236
  %v253 = vsel %vm247, %v234, %v238
  %v254 = vsel %vm247, %v244, %v232
  %v255 = vsel %vm247, %v246, %v234
  %s256 = scalar_lea.vmem %s3, 3
  %v257 = vld [vmem:[%s256] ss:$8 sm:$0xf]
  %v259 = vlaneseq
  %v260 = vshrl.u32 %v259, 7
  %v261 = vsub.s32 0, %v260
  %v262 = vrot.slane %v257, %v261
  %v263 = vlaneseq
  %v264 = vshrl.u32 %v263, 7
  %v265 = vsub.s32 1, %v264
  %v266 = vrot.slane %v257, %v265
  %v267 = vlaneseq
  %v268 = vshrl.u32 %v267, 7
  %v269 = vsub.s32 2, %v268
  %v270 = vrot.slane %v257, %v269
  %v271 = vlaneseq
  %v272 = vshrl.u32 %v271, 7
  %v273 = vsub.s32 3, %v272
  %v274 = vrot.slane %v257, %v273
  %v279 = vmul.f32 %v254, %v262
  %v280 = vmul.f32 %v252, %v266
  %v281 = vmul.f32 %v250, %v270
  %v282 = vmul.f32 %v248, %v274
  %v283 = vmul.f32 %v255, %v262
  %v284 = vmul.f32 %v253, %v266
  %v285 = vmul.f32 %v251, %v270
  %v286 = vmul.f32 %v249, %v274
  %v287 = vpack.c.bf16 %v283, %v279
  %v288 = vpack.c.bf16 %v284, %v280
  %v289 = vpack.c.bf16 %v285, %v281
  %v290 = vpack.c.bf16 %v286, %v282
  %291 = vst [vmem:[#allocation2 + $0x60] sm:$0xff] %v287
  %292 = vst [vmem:[#allocation2 + $0x68] sm:$0xff] %v288
  %293 = vst [vmem:[#allocation2 + $0x70] sm:$0xff] %v289
  %294 = vst [vmem:[#allocation2 + $0x78] sm:$0xff] %v290
  %v295 = vpack.c.bf16 %v34, %v30
  %v296 = vpack.c.bf16 %v35, %v31
  %v297 = vpack.c.bf16 %v36, %v32
  %v298 = vpack.c.bf16 %v37, %v33
  %299 = vst [vmem:[#allocation2 + $0x80] sm:$0xff] %v295
  %300 = vst [vmem:[#allocation2 + $0x88] sm:$0xff] %v296
  %301 = vst [vmem:[#allocation2 + $0x90] sm:$0xff] %v297
  %302 = vst [vmem:[#allocation2 + $0x98] sm:$0xff] %v298
  %303 = vrot.lane.b32.xlu0 %v30, 127
  %v304 = vpop.permute.xlu0 %303
  %305 = vrot.lane.b32.xlu0 %v34, 127
  %v306 = vpop.permute.xlu0 %305
  %307 = vrot.lane.b32.xlu0 %v31, 127
  %v308 = vpop.permute.xlu0 %307
  %309 = vrot.lane.b32.xlu0 %v35, 127
  %v310 = vpop.permute.xlu0 %309
  %311 = vrot.lane.b32.xlu0 %v32, 127
  %v312 = vpop.permute.xlu0 %311
  %313 = vrot.lane.b32.xlu0 %v36, 127
  %v314 = vpop.permute.xlu0 %313
  %315 = vrot.lane.b32.xlu0 %v33, 127
  %v316 = vpop.permute.xlu0 %315
  %317 = vrot.lane.b32.xlu0 %v37, 127
  %v318 = vpop.permute.xlu0 %317
  %vm319 = vcmp.lt.s32.totalorder %v55, 127
  %v320 = vsel %vm319, %v312, %v316
  %v321 = vsel %vm319, %v314, %v318
  %v322 = vsel %vm319, %v308, %v312
  %v323 = vsel %vm319, %v310, %v314
  %v324 = vsel %vm319, %v304, %v308
  %v325 = vsel %vm319, %v306, %v310
  %v326 = vsel %vm319, %v316, %v304
  %v327 = vsel %vm319, %v318, %v306
  %s328 = scalar_lea.vmem %s3, 5
  %v329 = vld [vmem:[%s328] ss:$8 sm:$0xf]
  %v331 = vlaneseq
  %v332 = vshrl.u32 %v331, 7
  %v333 = vsub.s32 0, %v332
  %v334 = vrot.slane %v329, %v333
  %v335 = vlaneseq
  %v336 = vshrl.u32 %v335, 7
  %v337 = vsub.s32 1, %v336
  %v338 = vrot.slane %v329, %v337
  %v339 = vlaneseq
  %v340 = vshrl.u32 %v339, 7
  %v341 = vsub.s32 2, %v340
  %v342 = vrot.slane %v329, %v341
  %v343 = vlaneseq
  %v344 = vshrl.u32 %v343, 7
  %v345 = vsub.s32 3, %v344
  %v346 = vrot.slane %v329, %v345
  %v351 = vmul.f32 %v324, %v334
  %v352 = vmul.f32 %v322, %v338
  %v353 = vmul.f32 %v320, %v342
  %v354 = vmul.f32 %v326, %v346
  %v355 = vmul.f32 %v325, %v334
  %v356 = vmul.f32 %v323, %v338
  %v357 = vmul.f32 %v321, %v342
  %v358 = vmul.f32 %v327, %v346
  %v359 = vpack.c.bf16 %v355, %v351
  %v360 = vpack.c.bf16 %v356, %v352
  %v361 = vpack.c.bf16 %v357, %v353
  %v362 = vpack.c.bf16 %v358, %v354
  %363 = vst [vmem:[#allocation2 + $0xa0] sm:$0xff] %v359
  %364 = vst [vmem:[#allocation2 + $0xa8] sm:$0xff] %v360
  %365 = vst [vmem:[#allocation2 + $0xb0] sm:$0xff] %v361
  %366 = vst [vmem:[#allocation2 + $0xb8] sm:$0xff] %v362
  %367 = vrot.lane.b32.xlu0 %v30, 113
  %v368 = vpop.permute.xlu0 %367
  %369 = vrot.lane.b32.xlu0 %v34, 113
  %v370 = vpop.permute.xlu0 %369
  %371 = vrot.lane.b32.xlu0 %v31, 113
  %v372 = vpop.permute.xlu0 %371
  %373 = vrot.lane.b32.xlu0 %v35, 113
  %v374 = vpop.permute.xlu0 %373
  %375 = vrot.lane.b32.xlu0 %v32, 113
  %v376 = vpop.permute.xlu0 %375
  %377 = vrot.lane.b32.xlu0 %v36, 113
  %v378 = vpop.permute.xlu0 %377
  %379 = vrot.lane.b32.xlu0 %v33, 113
  %v380 = vpop.permute.xlu0 %379
  %381 = vrot.lane.b32.xlu0 %v37, 113
  %v382 = vpop.permute.xlu0 %381
  %vm383 = vcmp.lt.s32.totalorder %v55, 113
  %v384 = vsel %vm383, %v376, %v380
  %v385 = vsel %vm383, %v378, %v382
  %v386 = vsel %vm383, %v372, %v376
  %v387 = vsel %vm383, %v374, %v378
  %v388 = vsel %vm383, %v368, %v372
  %v389 = vsel %vm383, %v370, %v374
  %v390 = vsel %vm383, %v380, %v368
  %v391 = vsel %vm383, %v382, %v370
  %s392 = scalar_lea.vmem %s3, 6
  %v393 = vld [vmem:[%s392] ss:$8 sm:$0xf]
  %v395 = vlaneseq
  %v396 = vshrl.u32 %v395, 7
  %v397 = vsub.s32 0, %v396
  %v398 = vrot.slane %v393, %v397
  %v399 = vlaneseq
  %v400 = vshrl.u32 %v399, 7
  %v401 = vsub.s32 1, %v400
  %v402 = vrot.slane %v393, %v401
  %v403 = vlaneseq
  %v404 = vshrl.u32 %v403, 7
  %v405 = vsub.s32 2, %v404
  %v406 = vrot.slane %v393, %v405
  %v407 = vlaneseq
  %v408 = vshrl.u32 %v407, 7
  %v409 = vsub.s32 3, %v408
  %v410 = vrot.slane %v393, %v409
  %v415 = vmul.f32 %v388, %v398
  %v416 = vmul.f32 %v386, %v402
  %v417 = vmul.f32 %v384, %v406
  %v418 = vmul.f32 %v390, %v410
  %v419 = vmul.f32 %v389, %v398
  %v420 = vmul.f32 %v387, %v402
  %v421 = vmul.f32 %v385, %v406
  %v422 = vmul.f32 %v391, %v410
  %v423 = vpack.c.bf16 %v419, %v415
  %v424 = vpack.c.bf16 %v420, %v416
  %v425 = vpack.c.bf16 %v421, %v417
  %v426 = vpack.c.bf16 %v422, %v418
  %427 = vst [vmem:[#allocation2 + $0xc0] sm:$0xff] %v423
  %428 = vst [vmem:[#allocation2 + $0xc8] sm:$0xff] %v424
  %429 = vst [vmem:[#allocation2 + $0xd0] sm:$0xff] %v425
  %430 = vst [vmem:[#allocation2 + $0xd8] sm:$0xff] %v426
  %431 = vrot.lane.b32.xlu0 %v30, 112
  %v432 = vpop.permute.xlu0 %431
  %433 = vrot.lane.b32.xlu0 %v34, 112
  %v434 = vpop.permute.xlu0 %433
  %435 = vrot.lane.b32.xlu0 %v31, 112
  %v436 = vpop.permute.xlu0 %435
  %437 = vrot.lane.b32.xlu0 %v35, 112
  %v438 = vpop.permute.xlu0 %437
  %439 = vrot.lane.b32.xlu0 %v32, 112
  %v440 = vpop.permute.xlu0 %439
  %441 = vrot.lane.b32.xlu0 %v36, 112
  %v442 = vpop.permute.xlu0 %441
  %443 = vrot.lane.b32.xlu0 %v33, 112
  %v444 = vpop.permute.xlu0 %443
  %445 = vrot.lane.b32.xlu0 %v37, 112
  %v446 = vpop.permute.xlu0 %445
  %vm447 = vcmp.lt.s32.totalorder %v55, 112
  %v448 = vsel %vm447, %v440, %v444
  %v449 = vsel %vm447, %v442, %v446
  %v450 = vsel %vm447, %v436, %v440
  %v451 = vsel %vm447, %v438, %v442
  %v452 = vsel %vm447, %v432, %v436
  %v453 = vsel %vm447, %v434, %v438
  %v454 = vsel %vm447, %v444, %v432
  %v455 = vsel %vm447, %v446, %v434
  %s456 = scalar_lea.vmem %s3, 7
  %v457 = vld [vmem:[%s456] ss:$8 sm:$0xf]
  %v459 = vlaneseq
  %v460 = vshrl.u32 %v459, 7
  %v461 = vsub.s32 0, %v460
  %v462 = vrot.slane %v457, %v461
  %v463 = vlaneseq
  %v464 = vshrl.u32 %v463, 7
  %v465 = vsub.s32 1, %v464
  %v466 = vrot.slane %v457, %v465
  %v467 = vlaneseq
  %v468 = vshrl.u32 %v467, 7
  %v469 = vsub.s32 2, %v468
  %v470 = vrot.slane %v457, %v469
  %v471 = vlaneseq
  %v472 = vshrl.u32 %v471, 7
  %v473 = vsub.s32 3, %v472
  %v474 = vrot.slane %v457, %v473
  %v479 = vmul.f32 %v452, %v462
  %v480 = vmul.f32 %v450, %v466
  %v481 = vmul.f32 %v448, %v470
  %v482 = vmul.f32 %v454, %v474
  %v483 = vmul.f32 %v453, %v462
  %v484 = vmul.f32 %v451, %v466
  %v485 = vmul.f32 %v449, %v470
  %v486 = vmul.f32 %v455, %v474
  %v487 = vpack.c.bf16 %v483, %v479
  %v488 = vpack.c.bf16 %v484, %v480
  %v489 = vpack.c.bf16 %v485, %v481
  %v490 = vpack.c.bf16 %v486, %v482
  %491 = vst [vmem:[#allocation2 + $0xe0] sm:$0xff] %v487
  %492 = vst [vmem:[#allocation2 + $0xe8] sm:$0xff] %v488
  %493 = vst [vmem:[#allocation2 + $0xf0] sm:$0xff] %v489
  %494 = vst [vmem:[#allocation2 + $0xf8] sm:$0xff] %v490
  %495 = vrot.lane.b32.xlu0 %v30, 111
  %v496 = vpop.permute.xlu0 %495
  %497 = vrot.lane.b32.xlu0 %v34, 111
  %v498 = vpop.permute.xlu0 %497
  %499 = vrot.lane.b32.xlu0 %v31, 111
  %v500 = vpop.permute.xlu0 %499
  %501 = vrot.lane.b32.xlu0 %v35, 111
  %v502 = vpop.permute.xlu0 %501
  %503 = vrot.lane.b32.xlu0 %v32, 111
  %v504 = vpop.permute.xlu0 %503
  %505 = vrot.lane.b32.xlu0 %v36, 111
  %v506 = vpop.permute.xlu0 %505
  %507 = vrot.lane.b32.xlu0 %v33, 111
  %v508 = vpop.permute.xlu0 %507
  %509 = vrot.lane.b32.xlu0 %v37, 111
  %v510 = vpop.permute.xlu0 %509
  %vm511 = vcmp.lt.s32.totalorder %v55, 111
  %v512 = vsel %vm511, %v504, %v508
  %v513 = vsel %vm511, %v506, %v510
  %v514 = vsel %vm511, %v500, %v504
  %v515 = vsel %vm511, %v502, %v506
  %v516 = vsel %vm511, %v496, %v500
  %v517 = vsel %vm511, %v498, %v502
  %v518 = vsel %vm511, %v508, %v496
  %v519 = vsel %vm511, %v510, %v498
  %s520 = scalar_lea.vmem %s3, 32
  %v521 = vld [vmem:[%s520] ss:$8 sm:$0xf]
  %v523 = vlaneseq
  %v524 = vshrl.u32 %v523, 7
  %v525 = vsub.s32 0, %v524
  %v526 = vrot.slane %v521, %v525
  %v527 = vlaneseq
  %v528 = vshrl.u32 %v527, 7
  %v529 = vsub.s32 1, %v528
  %v530 = vrot.slane %v521, %v529
  %v531 = vlaneseq
  %v532 = vshrl.u32 %v531, 7
  %v533 = vsub.s32 2, %v532
  %v534 = vrot.slane %v521, %v533
  %v535 = vlaneseq
  %v536 = vshrl.u32 %v535, 7
  %v537 = vsub.s32 3, %v536
  %v538 = vrot.slane %v521, %v537
  %v543 = vmul.f32 %v516, %v526
  %v544 = vmul.f32 %v514, %v530
  %v545 = vmul.f32 %v512, %v534
  %v546 = vmul.f32 %v518, %v538
  %v547 = vmul.f32 %v517, %v526
  %v548 = vmul.f32 %v515, %v530
  %v549 = vmul.f32 %v513, %v534
  %v550 = vmul.f32 %v519, %v538
  %v551 = vpack.c.bf16 %v547, %v543
  %v552 = vpack.c.bf16 %v548, %v544
  %v553 = vpack.c.bf16 %v549, %v545
  %v554 = vpack.c.bf16 %v550, %v546
  %555 = vst [vmem:[#allocation2 + $0x100] sm:$0xff] %v551
  %556 = vst [vmem:[#allocation2 + $0x108] sm:$0xff] %v552
  %557 = vst [vmem:[#allocation2 + $0x110] sm:$0xff] %v553
  %558 = vst [vmem:[#allocation2 + $0x118] sm:$0xff] %v554
  %v559 = vld [vmem:[%s1] sm:$0xff]
  %v560 = vld [vmem:[%s1 + $0x8] sm:$0xff]
  %v561 = vld [vmem:[#allocation2] sm:$0xff]
  %v562 = vld [vmem:[#allocation2 + $0x8] sm:$0xff]
  %v563 = vld [vmem:[#allocation2 + $0x10] sm:$0xff]
  %v564 = vld [vmem:[#allocation2 + $0x18] sm:$0xff]
  %v565 = vld [vmem:[#allocation2 + $0x20] sm:$0xff]
  %v566 = vld [vmem:[#allocation2 + $0x28] sm:$0xff]
  %v567 = vld [vmem:[#allocation2 + $0x30] sm:$0xff]
  %v568 = vld [vmem:[#allocation2 + $0x38] sm:$0xff]
  %v569 = vld [vmem:[#allocation2 + $0x40] sm:$0xff]
  %v570 = vld [vmem:[#allocation2 + $0x48] sm:$0xff]
  %v571 = vld [vmem:[#allocation2 + $0x50] sm:$0xff]
  %v572 = vld [vmem:[#allocation2 + $0x58] sm:$0xff]
  %v573 = vld [vmem:[#allocation2 + $0x60] sm:$0xff]
  %v574 = vld [vmem:[#allocation2 + $0x68] sm:$0xff]
  %v575 = vld [vmem:[#allocation2 + $0x70] sm:$0xff]
  %v576 = vld [vmem:[#allocation2 + $0x78] sm:$0xff]
  %v577 = vld [vmem:[#allocation2 + $0x80] sm:$0xff]
  %v578 = vld [vmem:[#allocation2 + $0x88] sm:$0xff]
  %v579 = vld [vmem:[#allocation2 + $0x90] sm:$0xff]
  %v580 = vld [vmem:[#allocation2 + $0x98] sm:$0xff]
  %v581 = vld [vmem:[#allocation2 + $0xa0] sm:$0xff]
  %v582 = vld [vmem:[#allocation2 + $0xa8] sm:$0xff]
  %v583 = vld [vmem:[#allocation2 + $0xb0] sm:$0xff]
  %v584 = vld [vmem:[#allocation2 + $0xb8] sm:$0xff]
  %v585 = vld [vmem:[#allocation2 + $0xc0] sm:$0xff]
  %v586 = vld [vmem:[#allocation2 + $0xc8] sm:$0xff]
  %v587 = vld [vmem:[#allocation2 + $0xd0] sm:$0xff]
  %v588 = vld [vmem:[#allocation2 + $0xd8] sm:$0xff]
  %v589 = vld [vmem:[#allocation2 + $0xe0] sm:$0xff]
  %v590 = vld [vmem:[#allocation2 + $0xe8] sm:$0xff]
  %v591 = vld [vmem:[#allocation2 + $0xf0] sm:$0xff]
  %v592 = vld [vmem:[#allocation2 + $0xf8] sm:$0xff]
  %v593 = vld [vmem:[#allocation2 + $0x100] sm:$0xff]
  %v594 = vld [vmem:[#allocation2 + $0x108] sm:$0xff]
  %v595 = vld [vmem:[#allocation2 + $0x110] sm:$0xff]
  %v596 = vld [vmem:[#allocation2 + $0x118] sm:$0xff]
  %v599 = vunpack.c.l.b16 %v559
  %v600 = vunpack.c.h.b16 %v559
  %v601 = vunpack.c.l.b16 %v560
  %v602 = vunpack.c.h.b16 %v560
  %v603 = vpack.c.b16 %v601, %v599
  %v604 = vpack.c.b16 %v602, %v600
  %vm606 = vcmask 130048
  %v608 = vsel %vm606, %v604, 0
  %610 = vmatprep.subr.bf16.mxu0 %v562
  %611 = vmatpush1.bf16.msra.mxu0 %v561
  %612 = vmatprep.subr.bf16.mxu0 %v566
  %613 = vmatpush1.bf16.msra.mxu0 %v565
  %614 = vmatprep.subr.bf16.mxu0 %v570
  %615 = vmatpush1.bf16.msra.mxu0 %v569
  %616 = vmatprep.subr.bf16.mxu0 %v574
  %617 = vmatpush1.bf16.msra.mxu0 %v573
  %618 = vmatprep.subr.bf16.mxu0 %v578
  %619 = vmatpush1.bf16.msra.mxu0 %v577
  %620 = vmatprep.subr.bf16.mxu0 %v582
  %621 = vmatpush1.bf16.msra.mxu0 %v581
  %622 = vmatprep.subr.bf16.mxu0 %v586
  %623 = vmatpush1.bf16.msra.mxu0 %v585
  %624 = vmatprep.subr.bf16.mxu0 %v590
  %625 = vmatpush1.bf16.msra.mxu0 %v589
  %626 = vmatprep.subr.bf16.mxu0 %v594
  %627 = vmatpush1.bf16.msra.mxu0 %v593
  %628 = vmatprep.subr.bf16.mxu0 0
  %629 = vmatpush1.bf16.msra.mxu0 0
  %630 = vmatprep.subr.bf16.mxu0 0
  %631 = vmatpush1.bf16.msra.mxu0 0
  %632 = vmatprep.subr.bf16.mxu0 0
  %633 = vmatpush1.bf16.msra.mxu0 0
  %634 = vmatprep.subr.bf16.mxu0 0
  %635 = vmatpush1.bf16.msra.mxu0 0
  %636 = vmatprep.subr.bf16.mxu0 0
  %637 = vmatpush1.bf16.msra.mxu0 0
  %638 = vmatprep.subr.bf16.mxu0 0
  %639 = vmatpush1.bf16.msra.mxu0 0
  %640 = vmatprep.subr.bf16.mxu0 0
  %641 = vmatpush1.bf16.msra.mxu0 0
  %642 = vmatprep.mubr.bf16.mxu0 %v608
  %643 = vmatmul.mubr.bf16.gmra.mrb[0].mxu0 %v603
  %v644 = vpop.f32.mrb[0].mxu0
  %v645 = vadd.f32 0.0, %v644
  %v646 = vpop.f32.mrb[0].mxu0
  %v647 = vadd.f32 0.0, %v646
  %v648 = vpop.f32.mrb[0].mxu0
  %v649 = vadd.f32 0.0, %v648
  %v650 = vpop.f32.mrb[0].mxu0
  %v651 = vadd.f32 0.0, %v650
  %652 = vdwg.mxu0
  %653 = vmatprep.subr.bf16.mxu0 %v564
  %654 = vmatpush1.bf16.msra.mxu0 %v563
  %655 = vmatprep.subr.bf16.mxu0 %v568
  %656 = vmatpush1.bf16.msra.mxu0 %v567
  %657 = vmatprep.subr.bf16.mxu0 %v572
  %658 = vmatpush1.bf16.msra.mxu0 %v571
  %659 = vmatprep.subr.bf16.mxu0 %v576
  %660 = vmatpush1.bf16.msra.mxu0 %v575
  %661 = vmatprep.subr.bf16.mxu0 %v580
  %662 = vmatpush1.bf16.msra.mxu0 %v579
  %663 = vmatprep.subr.bf16.mxu0 %v584
  %664 = vmatpush1.bf16.msra.mxu0 %v583
  %665 = vmatprep.subr.bf16.mxu0 %v588
  %666 = vmatpush1.bf16.msra.mxu0 %v587
  %667 = vmatprep.subr.bf16.mxu0 %v592
  %668 = vmatpush1.bf16.msra.mxu0 %v591
  %669 = vmatprep.subr.bf16.mxu0 %v596
  %670 = vmatpush1.bf16.msra.mxu0 %v595
  %671 = vmatprep.subr.bf16.mxu0 0
  %672 = vmatpush1.bf16.msra.mxu0 0
  %673 = vmatprep.subr.bf16.mxu0 0
  %674 = vmatpush1.bf16.msra.mxu0 0
  %675 = vmatprep.subr.bf16.mxu0 0
  %676 = vmatpush1.bf16.msra.mxu0 0
  %677 = vmatprep.subr.bf16.mxu0 0
  %678 = vmatpush1.bf16.msra.mxu0 0
  %679 = vmatprep.subr.bf16.mxu0 0
  %680 = vmatpush1.bf16.msra.mxu0 0
  %681 = vmatprep.subr.bf16.mxu0 0
  %682 = vmatpush1.bf16.msra.mxu0 0
  %683 = vmatprep.subr.bf16.mxu0 0
  %684 = vmatpush1.bf16.msra.mxu0 0
  %685 = vmatprep.mubr.bf16.mxu0 %v608
  %686 = vmatmul.mubr.bf16.gmra.mrb[0].mxu0 %v603
  %v687 = vpop.f32.mrb[0].mxu0
  %v688 = vadd.f32 0.0, %v687
  %v689 = vpop.f32.mrb[0].mxu0
  %v690 = vadd.f32 0.0, %v689
  %v691 = vpop.f32.mrb[0].mxu0
  %v692 = vadd.f32 0.0, %v691
  %v693 = vpop.f32.mrb[0].mxu0
  %v694 = vadd.f32 0.0, %v693
  %695 = vdwg.mxu0
  %v696 = vld [vmem:[%s4] sm:$0xff]
  %v697 = vld [vmem:[%s4 + $0x8] sm:$0xff]
  %v698 = vld [vmem:[%s5] sm:$0xff]
  %v699 = vld [vmem:[%s5 + $0x8] sm:$0xff]
  %v700 = vadd.f32 %v645, %v647
  %v701 = vadd.f32 %v700, %v688
  %v702 = vadd.f32 %v701, %v690
  %703 = vadd.xlane.f32.xlu0 %v702
  %v704 = vpop.xlane.xlu0 %703
  %v705 = vadd.f32 %v649, %v651
  %v706 = vadd.f32 %v705, %v692
  %v707 = vadd.f32 %v706, %v694
  %708 = vadd.xlane.f32.xlu0 %v707
  %v709 = vpop.xlane.xlu0 %708
  %v710 = vrcp.pop 512.0
  %v711 = vmul.f32 %v704, %v710
  %v712 = vmul.f32 %v709, %v710
  %v713 = vmul.f32 %v645, %v645
  %v714 = vmul.f32 %v647, %v647
  %v715 = vmul.f32 %v688, %v688
  %v716 = vmul.f32 %v690, %v690
  %v717 = vmul.f32 %v649, %v649
  %v718 = vmul.f32 %v651, %v651
  %v719 = vmul.f32 %v692, %v692
  %v720 = vmul.f32 %v694, %v694
  %v721 = vadd.f32 %v713, %v714
  %v722 = vadd.f32 %v721, %v715
  %v723 = vadd.f32 %v722, %v716
  %724 = vadd.xlane.f32.xlu0 %v723
  %v725 = vpop.xlane.xlu0 %724
  %v726 = vadd.f32 %v717, %v718
  %v727 = vadd.f32 %v726, %v719
  %v728 = vadd.f32 %v727, %v720
  %729 = vadd.xlane.f32.xlu0 %v728
  %v730 = vpop.xlane.xlu0 %729
  %v731 = vmul.f32 %v725, %v710
  %v732 = vmul.f32 %v730, %v710
  %v733 = vmul.f32 %v711, %v711
  %v734 = vmul.f32 %v712, %v712
  %v735 = vsub.f32 %v731, %v733
  %v736 = vsub.f32 %v732, %v734
  %v737 = vadd.f32 %v735, 1e-05
  %v738 = vadd.f32 %v736, 1e-05
  %v739 = vrsqrt.pop %v737
  %v740 = vrsqrt.pop %v738
  %v741 = vmul.f32 %v696, %v739
  %v742 = vmul.f32 %v697, %v740
  %v743 = vmul.f32 %v711, %v741
  %v744 = vmul.f32 %v712, %v742
  %v745 = vsub.f32 %v698, %v743
  %v746 = vsub.f32 %v699, %v744
  %748 = vset.pattern.permute.xlu0 0
  %749 = vperm.xlu0 %748, %v741
  %v750 = vpop.permute.xlu0 %749
  %753 = vset.pattern.permute.xlu0 0
  %754 = vperm.xlu0 %753, %v742
  %v755 = vpop.permute.xlu0 %754
  %v757 = vmul.f32 %v645, %v750
  %v758 = vmul.f32 %v647, %v750
  %v759 = vmul.f32 %v688, %v750
  %v760 = vmul.f32 %v690, %v750
  %v761 = vmul.f32 %v649, %v755
  %v762 = vmul.f32 %v651, %v755
  %v763 = vmul.f32 %v692, %v755
  %v764 = vmul.f32 %v694, %v755
  %766 = vset.pattern.permute.xlu0 0
  %767 = vperm.xlu0 %766, %v745
  %v768 = vpop.permute.xlu0 %767
  %771 = vset.pattern.permute.xlu0 0
  %772 = vperm.xlu0 %771, %v746
  %v773 = vpop.permute.xlu0 %772
  %v775 = vadd.f32 %v757, %v768
  %v776 = vadd.f32 %v758, %v768
  %v777 = vadd.f32 %v759, %v768
  %v778 = vadd.f32 %v760, %v768
  %v779 = vadd.f32 %v761, %v773
  %v780 = vadd.f32 %v762, %v773
  %v781 = vadd.f32 %v763, %v773
  %v782 = vadd.f32 %v764, %v773
  %v783 = vmax.f32 %v775, 0.0
  %v784 = vmax.f32 %v776, 0.0
  %v785 = vmax.f32 %v777, 0.0
  %v786 = vmax.f32 %v778, 0.0
  %v787 = vmax.f32 %v779, 0.0
  %v788 = vmax.f32 %v780, 0.0
  %v789 = vmax.f32 %v781, 0.0
  %v790 = vmax.f32 %v782, 0.0
  %791 = vrot.lane.b32.xlu0 %v783, 17
  %v792 = vpop.permute.xlu0 %791
  %793 = vrot.lane.b32.xlu0 %v787, 17
  %v794 = vpop.permute.xlu0 %793
  %795 = vrot.lane.b32.xlu0 %v784, 17
  %v796 = vpop.permute.xlu0 %795
  %797 = vrot.lane.b32.xlu0 %v788, 17
  %v798 = vpop.permute.xlu0 %797
  %799 = vrot.lane.b32.xlu0 %v785, 17
  %v800 = vpop.permute.xlu0 %799
  %801 = vrot.lane.b32.xlu0 %v789, 17
  %v802 = vpop.permute.xlu0 %801
  %803 = vrot.lane.b32.xlu0 %v786, 17
  %v804 = vpop.permute.xlu0 %803
  %805 = vrot.lane.b32.xlu0 %v790, 17
  %v806 = vpop.permute.xlu0 %805
  %v807 = vsel %vm56, %v800, %v804
  %v808 = vsel %vm56, %v802, %v806
  %v809 = vsel %vm56, %v796, %v800
  %v810 = vsel %vm56, %v798, %v802
  %v811 = vsel %vm56, %v792, %v796
  %v812 = vsel %vm56, %v794, %v798
  %v813 = vsel %vm56, %v804, %v792
  %v814 = vsel %vm56, %v806, %v794
  %v815 = vld [vmem:[%s3] ss:$8 sm:$0xf]
  %v817 = vlaneseq
  %v818 = vshrl.u32 %v817, 7
  %v819 = vsub.s32 0, %v818
  %v820 = vrot.slane %v815, %v819
  %v821 = vlaneseq
  %v822 = vshrl.u32 %v821, 7
  %v823 = vsub.s32 1, %v822
  %v824 = vrot.slane %v815, %v823
  %v825 = vlaneseq
  %v826 = vshrl.u32 %v825, 7
  %v827 = vsub.s32 2, %v826
  %v828 = vrot.slane %v815, %v827
  %v829 = vlaneseq
  %v830 = vshrl.u32 %v829, 7
  %v831 = vsub.s32 3, %v830
  %v832 = vrot.slane %v815, %v831
  %v837 = vmul.f32 %v813, %v820
  %v838 = vmul.f32 %v811, %v824
  %v839 = vmul.f32 %v809, %v828
  %v840 = vmul.f32 %v807, %v832
  %v841 = vmul.f32 %v814, %v820
  %v842 = vmul.f32 %v812, %v824
  %v843 = vmul.f32 %v810, %v828
  %v844 = vmul.f32 %v808, %v832
  %v845 = vpack.c.bf16 %v841, %v837
  %v846 = vpack.c.bf16 %v842, %v838
  %v847 = vpack.c.bf16 %v843, %v839
  %v848 = vpack.c.bf16 %v844, %v840
  %849 = vst [vmem:[#allocation2] sm:$0xff] %v845
  %850 = vst [vmem:[#allocation2 + $0x8] sm:$0xff] %v846
  %851 = vst [vmem:[#allocation2 + $0x10] sm:$0xff] %v847
  %852 = vst [vmem:[#allocation2 + $0x18] sm:$0xff] %v848
  %853 = vrot.lane.b32.xlu0 %v783, 16
  %v854 = vpop.permute.xlu0 %853
  %855 = vrot.lane.b32.xlu0 %v787, 16
  %v856 = vpop.permute.xlu0 %855
  %857 = vrot.lane.b32.xlu0 %v784, 16
  %v858 = vpop.permute.xlu0 %857
  %859 = vrot.lane.b32.xlu0 %v788, 16
  %v860 = vpop.permute.xlu0 %859
  %861 = vrot.lane.b32.xlu0 %v785, 16
  %v862 = vpop.permute.xlu0 %861
  %863 = vrot.lane.b32.xlu0 %v789, 16
  %v864 = vpop.permute.xlu0 %863
  %865 = vrot.lane.b32.xlu0 %v786, 16
  %v866 = vpop.permute.xlu0 %865
  %867 = vrot.lane.b32.xlu0 %v790, 16
  %v868 = vpop.permute.xlu0 %867
  %v869 = vsel %vm119, %v862, %v866
  %v870 = vsel %vm119, %v864, %v868
  %v871 = vsel %vm119, %v858, %v862
  %v872 = vsel %vm119, %v860, %v864
  %v873 = vsel %vm119, %v854, %v858
  %v874 = vsel %vm119, %v856, %v860
  %v875 = vsel %vm119, %v866, %v854
  %v876 = vsel %vm119, %v868, %v856
  %v877 = vld [vmem:[%s128] ss:$8 sm:$0xf]
  %v879 = vlaneseq
  %v880 = vshrl.u32 %v879, 7
  %v881 = vsub.s32 0, %v880
  %v882 = vrot.slane %v877, %v881
  %v883 = vlaneseq
  %v884 = vshrl.u32 %v883, 7
  %v885 = vsub.s32 1, %v884
  %v886 = vrot.slane %v877, %v885
  %v887 = vlaneseq
  %v888 = vshrl.u32 %v887, 7
  %v889 = vsub.s32 2, %v888
  %v890 = vrot.slane %v877, %v889
  %v891 = vlaneseq
  %v892 = vshrl.u32 %v891, 7
  %v893 = vsub.s32 3, %v892
  %v894 = vrot.slane %v877, %v893
  %v899 = vmul.f32 %v875, %v882
  %v900 = vmul.f32 %v873, %v886
  %v901 = vmul.f32 %v871, %v890
  %v902 = vmul.f32 %v869, %v894
  %v903 = vmul.f32 %v876, %v882
  %v904 = vmul.f32 %v874, %v886
  %v905 = vmul.f32 %v872, %v890
  %v906 = vmul.f32 %v870, %v894
  %v907 = vpack.c.bf16 %v903, %v899
  %v908 = vpack.c.bf16 %v904, %v900
  %v909 = vpack.c.bf16 %v905, %v901
  %v910 = vpack.c.bf16 %v906, %v902
  %911 = vst [vmem:[#allocation2 + $0x20] sm:$0xff] %v907
  %912 = vst [vmem:[#allocation2 + $0x28] sm:$0xff] %v908
  %913 = vst [vmem:[#allocation2 + $0x30] sm:$0xff] %v909
  %914 = vst [vmem:[#allocation2 + $0x38] sm:$0xff] %v910
  %915 = vrot.lane.b32.xlu0 %v783, 15
  %v916 = vpop.permute.xlu0 %915
  %917 = vrot.lane.b32.xlu0 %v787, 15
  %v918 = vpop.permute.xlu0 %917
  %919 = vrot.lane.b32.xlu0 %v784, 15
  %v920 = vpop.permute.xlu0 %919
  %921 = vrot.lane.b32.xlu0 %v788, 15
  %v922 = vpop.permute.xlu0 %921
  %923 = vrot.lane.b32.xlu0 %v785, 15
  %v924 = vpop.permute.xlu0 %923
  %925 = vrot.lane.b32.xlu0 %v789, 15
  %v926 = vpop.permute.xlu0 %925
  %927 = vrot.lane.b32.xlu0 %v786, 15
  %v928 = vpop.permute.xlu0 %927
  %929 = vrot.lane.b32.xlu0 %v790, 15
  %v930 = vpop.permute.xlu0 %929
  %v931 = vsel %vm183, %v924, %v928
  %v932 = vsel %vm183, %v926, %v930
  %v933 = vsel %vm183, %v920, %v924
  %v934 = vsel %vm183, %v922, %v926
  %v935 = vsel %vm183, %v916, %v920
  %v936 = vsel %vm183, %v918, %v922
  %v937 = vsel %vm183, %v928, %v916
  %v938 = vsel %vm183, %v930, %v918
  %v939 = vld [vmem:[%s192] ss:$8 sm:$0xf]
  %v941 = vlaneseq
  %v942 = vshrl.u32 %v941, 7
  %v943 = vsub.s32 0, %v942
  %v944 = vrot.slane %v939, %v943
  %v945 = vlaneseq
  %v946 = vshrl.u32 %v945, 7
  %v947 = vsub.s32 1, %v946
  %v948 = vrot.slane %v939, %v947
  %v949 = vlaneseq
  %v950 = vshrl.u32 %v949, 7
  %v951 = vsub.s32 2, %v950
  %v952 = vrot.slane %v939, %v951
  %v953 = vlaneseq
  %v954 = vshrl.u32 %v953, 7
  %v955 = vsub.s32 3, %v954
  %v956 = vrot.slane %v939, %v955
  %v961 = vmul.f32 %v937, %v944
  %v962 = vmul.f32 %v935, %v948
  %v963 = vmul.f32 %v933, %v952
  %v964 = vmul.f32 %v931, %v956
  %v965 = vmul.f32 %v938, %v944
  %v966 = vmul.f32 %v936, %v948
  %v967 = vmul.f32 %v934, %v952
  %v968 = vmul.f32 %v932, %v956
  %v969 = vpack.c.bf16 %v965, %v961
  %v970 = vpack.c.bf16 %v966, %v962
  %v971 = vpack.c.bf16 %v967, %v963
  %v972 = vpack.c.bf16 %v968, %v964
  %973 = vst [vmem:[#allocation2 + $0x40] sm:$0xff] %v969
  %974 = vst [vmem:[#allocation2 + $0x48] sm:$0xff] %v970
  %975 = vst [vmem:[#allocation2 + $0x50] sm:$0xff] %v971
  %976 = vst [vmem:[#allocation2 + $0x58] sm:$0xff] %v972
  %977 = vrot.lane.b32.xlu0 %v783, 1
  %v978 = vpop.permute.xlu0 %977
  %979 = vrot.lane.b32.xlu0 %v787, 1
  %v980 = vpop.permute.xlu0 %979
  %981 = vrot.lane.b32.xlu0 %v784, 1
  %v982 = vpop.permute.xlu0 %981
  %983 = vrot.lane.b32.xlu0 %v788, 1
  %v984 = vpop.permute.xlu0 %983
  %985 = vrot.lane.b32.xlu0 %v785, 1
  %v986 = vpop.permute.xlu0 %985
  %987 = vrot.lane.b32.xlu0 %v789, 1
  %v988 = vpop.permute.xlu0 %987
  %989 = vrot.lane.b32.xlu0 %v786, 1
  %v990 = vpop.permute.xlu0 %989
  %991 = vrot.lane.b32.xlu0 %v790, 1
  %v992 = vpop.permute.xlu0 %991
  %v993 = vsel %vm247, %v986, %v990
  %v994 = vsel %vm247, %v988, %v992
  %v995 = vsel %vm247, %v982, %v986
  %v996 = vsel %vm247, %v984, %v988
  %v997 = vsel %vm247, %v978, %v982
  %v998 = vsel %vm247, %v980, %v984
  %v999 = vsel %vm247, %v990, %v978
  %v1000 = vsel %vm247, %v992, %v980
  %v1001 = vld [vmem:[%s256] ss:$8 sm:$0xf]
  %v1003 = vlaneseq
  %v1004 = vshrl.u32 %v1003, 7
  %v1005 = vsub.s32 0, %v1004
  %v1006 = vrot.slane %v1001, %v1005
  %v1007 = vlaneseq
  %v1008 = vshrl.u32 %v1007, 7
  %v1009 = vsub.s32 1, %v1008
  %v1010 = vrot.slane %v1001, %v1009
  %v1011 = vlaneseq
  %v1012 = vshrl.u32 %v1011, 7
  %v1013 = vsub.s32 2, %v1012
  %v1014 = vrot.slane %v1001, %v1013
  %v1015 = vlaneseq
  %v1016 = vshrl.u32 %v1015, 7
  %v1017 = vsub.s32 3, %v1016
  %v1018 = vrot.slane %v1001, %v1017
  %v1023 = vmul.f32 %v999, %v1006
  %v1024 = vmul.f32 %v997, %v1010
  %v1025 = vmul.f32 %v995, %v1014
  %v1026 = vmul.f32 %v993, %v1018
  %v1027 = vmul.f32 %v1000, %v1006
  %v1028 = vmul.f32 %v998, %v1010
  %v1029 = vmul.f32 %v996, %v1014
  %v1030 = vmul.f32 %v994, %v1018
  %v1031 = vpack.c.bf16 %v1027, %v1023
  %v1032 = vpack.c.bf16 %v1028, %v1024
  %v1033 = vpack.c.bf16 %v1029, %v1025
  %v1034 = vpack.c.bf16 %v1030, %v1026
  %1035 = vst [vmem:[#allocation2 + $0x60] sm:$0xff] %v1031
  %1036 = vst [vmem:[#allocation2 + $0x68] sm:$0xff] %v1032
  %1037 = vst [vmem:[#allocation2 + $0x70] sm:$0xff] %v1033
  %1038 = vst [vmem:[#allocation2 + $0x78] sm:$0xff] %v1034
  %v1039 = vpack.c.bf16 %v787, %v783
  %v1040 = vpack.c.bf16 %v788, %v784
  %v1041 = vpack.c.bf16 %v789, %v785
  %v1042 = vpack.c.bf16 %v790, %v786
  %1043 = vst [vmem:[#allocation2 + $0x80] sm:$0xff] %v1039
  %1044 = vst [vmem:[#allocation2 + $0x88] sm:$0xff] %v1040
  %1045 = vst [vmem:[#allocation2 + $0x90] sm:$0xff] %v1041
  %1046 = vst [vmem:[#allocation2 + $0x98] sm:$0xff] %v1042
  %1047 = vrot.lane.b32.xlu0 %v783, 127
  %v1048 = vpop.permute.xlu0 %1047
  %1049 = vrot.lane.b32.xlu0 %v787, 127
  %v1050 = vpop.permute.xlu0 %1049
  %1051 = vrot.lane.b32.xlu0 %v784, 127
  %v1052 = vpop.permute.xlu0 %1051
  %1053 = vrot.lane.b32.xlu0 %v788, 127
  %v1054 = vpop.permute.xlu0 %1053
  %1055 = vrot.lane.b32.xlu0 %v785, 127
  %v1056 = vpop.permute.xlu0 %1055
  %1057 = vrot.lane.b32.xlu0 %v789, 127
  %v1058 = vpop.permute.xlu0 %1057
  %1059 = vrot.lane.b32.xlu0 %v786, 127
  %v1060 = vpop.permute.xlu0 %1059
  %1061 = vrot.lane.b32.xlu0 %v790, 127
  %v1062 = vpop.permute.xlu0 %1061
  %v1063 = vsel %vm319, %v1056, %v1060
  %v1064 = vsel %vm319, %v1058, %v1062
  %v1065 = vsel %vm319, %v1052, %v1056
  %v1066 = vsel %vm319, %v1054, %v1058
  %v1067 = vsel %vm319, %v1048, %v1052
  %v1068 = vsel %vm319, %v1050, %v1054
  %v1069 = vsel %vm319, %v1060, %v1048
  %v1070 = vsel %vm319, %v1062, %v1050
  %v1071 = vld [vmem:[%s328] ss:$8 sm:$0xf]
  %v1073 = vlaneseq
  %v1074 = vshrl.u32 %v1073, 7
  %v1075 = vsub.s32 0, %v1074
  %v1076 = vrot.slane %v1071, %v1075
  %v1077 = vlaneseq
  %v1078 = vshrl.u32 %v1077, 7
  %v1079 = vsub.s32 1, %v1078
  %v1080 = vrot.slane %v1071, %v1079
  %v1081 = vlaneseq
  %v1082 = vshrl.u32 %v1081, 7
  %v1083 = vsub.s32 2, %v1082
  %v1084 = vrot.slane %v1071, %v1083
  %v1085 = vlaneseq
  %v1086 = vshrl.u32 %v1085, 7
  %v1087 = vsub.s32 3, %v1086
  %v1088 = vrot.slane %v1071, %v1087
  %v1093 = vmul.f32 %v1067, %v1076
  %v1094 = vmul.f32 %v1065, %v1080
  %v1095 = vmul.f32 %v1063, %v1084
  %v1096 = vmul.f32 %v1069, %v1088
  %v1097 = vmul.f32 %v1068, %v1076
  %v1098 = vmul.f32 %v1066, %v1080
  %v1099 = vmul.f32 %v1064, %v1084
  %v1100 = vmul.f32 %v1070, %v1088
  %v1101 = vpack.c.bf16 %v1097, %v1093
  %v1102 = vpack.c.bf16 %v1098, %v1094
  %v1103 = vpack.c.bf16 %v1099, %v1095
  %v1104 = vpack.c.bf16 %v1100, %v1096
  %1105 = vst [vmem:[#allocation2 + $0xa0] sm:$0xff] %v1101
  %1106 = vst [vmem:[#allocation2 + $0xa8] sm:$0xff] %v1102
  %1107 = vst [vmem:[#allocation2 + $0xb0] sm:$0xff] %v1103
  %1108 = vst [vmem:[#allocation2 + $0xb8] sm:$0xff] %v1104
  %1109 = vrot.lane.b32.xlu0 %v783, 113
  %v1110 = vpop.permute.xlu0 %1109
  %1111 = vrot.lane.b32.xlu0 %v787, 113
  %v1112 = vpop.permute.xlu0 %1111
  %1113 = vrot.lane.b32.xlu0 %v784, 113
  %v1114 = vpop.permute.xlu0 %1113
  %1115 = vrot.lane.b32.xlu0 %v788, 113
  %v1116 = vpop.permute.xlu0 %1115
  %1117 = vrot.lane.b32.xlu0 %v785, 113
  %v1118 = vpop.permute.xlu0 %1117
  %1119 = vrot.lane.b32.xlu0 %v789, 113
  %v1120 = vpop.permute.xlu0 %1119
  %1121 = vrot.lane.b32.xlu0 %v786, 113
  %v1122 = vpop.permute.xlu0 %1121
  %1123 = vrot.lane.b32.xlu0 %v790, 113
  %v1124 = vpop.permute.xlu0 %1123
  %v1125 = vsel %vm383, %v1118, %v1122
  %v1126 = vsel %vm383, %v1120, %v1124
  %v1127 = vsel %vm383, %v1114, %v1118
  %v1128 = vsel %vm383, %v1116, %v1120
  %v1129 = vsel %vm383, %v1110, %v1114
  %v1130 = vsel %vm383, %v1112, %v1116
  %v1131 = vsel %vm383, %v1122, %v1110
  %v1132 = vsel %vm383, %v1124, %v1112
  %v1133 = vld [vmem:[%s392] ss:$8 sm:$0xf]
  %v1135 = vlaneseq
  %v1136 = vshrl.u32 %v1135, 7
  %v1137 = vsub.s32 0, %v1136
  %v1138 = vrot.slane %v1133, %v1137
  %v1139 = vlaneseq
  %v1140 = vshrl.u32 %v1139, 7
  %v1141 = vsub.s32 1, %v1140
  %v1142 = vrot.slane %v1133, %v1141
  %v1143 = vlaneseq
  %v1144 = vshrl.u32 %v1143, 7
  %v1145 = vsub.s32 2, %v1144
  %v1146 = vrot.slane %v1133, %v1145
  %v1147 = vlaneseq
  %v1148 = vshrl.u32 %v1147, 7
  %v1149 = vsub.s32 3, %v1148
  %v1150 = vrot.slane %v1133, %v1149
  %v1155 = vmul.f32 %v1129, %v1138
  %v1156 = vmul.f32 %v1127, %v1142
  %v1157 = vmul.f32 %v1125, %v1146
  %v1158 = vmul.f32 %v1131, %v1150
  %v1159 = vmul.f32 %v1130, %v1138
  %v1160 = vmul.f32 %v1128, %v1142
  %v1161 = vmul.f32 %v1126, %v1146
  %v1162 = vmul.f32 %v1132, %v1150
  %v1163 = vpack.c.bf16 %v1159, %v1155
  %v1164 = vpack.c.bf16 %v1160, %v1156
  %v1165 = vpack.c.bf16 %v1161, %v1157
  %v1166 = vpack.c.bf16 %v1162, %v1158
  %1167 = vst [vmem:[#allocation2 + $0xc0] sm:$0xff] %v1163
  %1168 = vst [vmem:[#allocation2 + $0xc8] sm:$0xff] %v1164
  %1169 = vst [vmem:[#allocation2 + $0xd0] sm:$0xff] %v1165
  %1170 = vst [vmem:[#allocation2 + $0xd8] sm:$0xff] %v1166
  %1171 = vrot.lane.b32.xlu0 %v783, 112
  %v1172 = vpop.permute.xlu0 %1171
  %1173 = vrot.lane.b32.xlu0 %v787, 112
  %v1174 = vpop.permute.xlu0 %1173
  %1175 = vrot.lane.b32.xlu0 %v784, 112
  %v1176 = vpop.permute.xlu0 %1175
  %1177 = vrot.lane.b32.xlu0 %v788, 112
  %v1178 = vpop.permute.xlu0 %1177
  %1179 = vrot.lane.b32.xlu0 %v785, 112
  %v1180 = vpop.permute.xlu0 %1179
  %1181 = vrot.lane.b32.xlu0 %v789, 112
  %v1182 = vpop.permute.xlu0 %1181
  %1183 = vrot.lane.b32.xlu0 %v786, 112
  %v1184 = vpop.permute.xlu0 %1183
  %1185 = vrot.lane.b32.xlu0 %v790, 112
  %v1186 = vpop.permute.xlu0 %1185
  %v1187 = vsel %vm447, %v1180, %v1184
  %v1188 = vsel %vm447, %v1182, %v1186
  %v1189 = vsel %vm447, %v1176, %v1180
  %v1190 = vsel %vm447, %v1178, %v1182
  %v1191 = vsel %vm447, %v1172, %v1176
  %v1192 = vsel %vm447, %v1174, %v1178
  %v1193 = vsel %vm447, %v1184, %v1172
  %v1194 = vsel %vm447, %v1186, %v1174
  %v1195 = vld [vmem:[%s456] ss:$8 sm:$0xf]
  %v1197 = vlaneseq
  %v1198 = vshrl.u32 %v1197, 7
  %v1199 = vsub.s32 0, %v1198
  %v1200 = vrot.slane %v1195, %v1199
  %v1201 = vlaneseq
  %v1202 = vshrl.u32 %v1201, 7
  %v1203 = vsub.s32 1, %v1202
  %v1204 = vrot.slane %v1195, %v1203
  %v1205 = vlaneseq
  %v1206 = vshrl.u32 %v1205, 7
  %v1207 = vsub.s32 2, %v1206
  %v1208 = vrot.slane %v1195, %v1207
  %v1209 = vlaneseq
  %v1210 = vshrl.u32 %v1209, 7
  %v1211 = vsub.s32 3, %v1210
  %v1212 = vrot.slane %v1195, %v1211
  %v1217 = vmul.f32 %v1191, %v1200
  %v1218 = vmul.f32 %v1189, %v1204
  %v1219 = vmul.f32 %v1187, %v1208
  %v1220 = vmul.f32 %v1193, %v1212
  %v1221 = vmul.f32 %v1192, %v1200
  %v1222 = vmul.f32 %v1190, %v1204
  %v1223 = vmul.f32 %v1188, %v1208
  %v1224 = vmul.f32 %v1194, %v1212
  %v1225 = vpack.c.bf16 %v1221, %v1217
  %v1226 = vpack.c.bf16 %v1222, %v1218
  %v1227 = vpack.c.bf16 %v1223, %v1219
  %v1228 = vpack.c.bf16 %v1224, %v1220
  %1229 = vst [vmem:[#allocation2 + $0xe0] sm:$0xff] %v1225
  %1230 = vst [vmem:[#allocation2 + $0xe8] sm:$0xff] %v1226
  %1231 = vst [vmem:[#allocation2 + $0xf0] sm:$0xff] %v1227
  %1232 = vst [vmem:[#allocation2 + $0xf8] sm:$0xff] %v1228
  %1233 = vrot.lane.b32.xlu0 %v783, 111
  %v1234 = vpop.permute.xlu0 %1233
  %1235 = vrot.lane.b32.xlu0 %v787, 111
  %v1236 = vpop.permute.xlu0 %1235
  %1237 = vrot.lane.b32.xlu0 %v784, 111
  %v1238 = vpop.permute.xlu0 %1237
  %1239 = vrot.lane.b32.xlu0 %v788, 111
  %v1240 = vpop.permute.xlu0 %1239
  %1241 = vrot.lane.b32.xlu0 %v785, 111
  %v1242 = vpop.permute.xlu0 %1241
  %1243 = vrot.lane.b32.xlu0 %v789, 111
  %v1244 = vpop.permute.xlu0 %1243
  %1245 = vrot.lane.b32.xlu0 %v786, 111
  %v1246 = vpop.permute.xlu0 %1245
  %1247 = vrot.lane.b32.xlu0 %v790, 111
  %v1248 = vpop.permute.xlu0 %1247
  %v1249 = vsel %vm511, %v1242, %v1246
  %v1250 = vsel %vm511, %v1244, %v1248
  %v1251 = vsel %vm511, %v1238, %v1242
  %v1252 = vsel %vm511, %v1240, %v1244
  %v1253 = vsel %vm511, %v1234, %v1238
  %v1254 = vsel %vm511, %v1236, %v1240
  %v1255 = vsel %vm511, %v1246, %v1234
  %v1256 = vsel %vm511, %v1248, %v1236
  %v1257 = vld [vmem:[%s520] ss:$8 sm:$0xf]
  %v1259 = vlaneseq
  %v1260 = vshrl.u32 %v1259, 7
  %v1261 = vsub.s32 0, %v1260
  %v1262 = vrot.slane %v1257, %v1261
  %v1263 = vlaneseq
  %v1264 = vshrl.u32 %v1263, 7
  %v1265 = vsub.s32 1, %v1264
  %v1266 = vrot.slane %v1257, %v1265
  %v1267 = vlaneseq
  %v1268 = vshrl.u32 %v1267, 7
  %v1269 = vsub.s32 2, %v1268
  %v1270 = vrot.slane %v1257, %v1269
  %v1271 = vlaneseq
  %v1272 = vshrl.u32 %v1271, 7
  %v1273 = vsub.s32 3, %v1272
  %v1274 = vrot.slane %v1257, %v1273
  %v1279 = vmul.f32 %v1253, %v1262
  %v1280 = vmul.f32 %v1251, %v1266
  %v1281 = vmul.f32 %v1249, %v1270
  %v1282 = vmul.f32 %v1255, %v1274
  %v1283 = vmul.f32 %v1254, %v1262
  %v1284 = vmul.f32 %v1252, %v1266
  %v1285 = vmul.f32 %v1250, %v1270
  %v1286 = vmul.f32 %v1256, %v1274
  %v1287 = vpack.c.bf16 %v1283, %v1279
  %v1288 = vpack.c.bf16 %v1284, %v1280
  %v1289 = vpack.c.bf16 %v1285, %v1281
  %v1290 = vpack.c.bf16 %v1286, %v1282
  %1291 = vst [vmem:[#allocation2 + $0x100] sm:$0xff] %v1287
  %1292 = vst [vmem:[#allocation2 + $0x108] sm:$0xff] %v1288
  %1293 = vst [vmem:[#allocation2 + $0x110] sm:$0xff] %v1289
  %1294 = vst [vmem:[#allocation2 + $0x118] sm:$0xff] %v1290
  %v1295 = vld [vmem:[%s2] sm:$0xff]
  %v1296 = vld [vmem:[%s2 + $0x8] sm:$0xff]
  %v1297 = vld [vmem:[#allocation2] sm:$0xff]
  %v1298 = vld [vmem:[#allocation2 + $0x8] sm:$0xff]
  %v1299 = vld [vmem:[#allocation2 + $0x10] sm:$0xff]
  %v1300 = vld [vmem:[#allocation2 + $0x18] sm:$0xff]
  %v1301 = vld [vmem:[#allocation2 + $0x20] sm:$0xff]
  %v1302 = vld [vmem:[#allocation2 + $0x28] sm:$0xff]
  %v1303 = vld [vmem:[#allocation2 + $0x30] sm:$0xff]
  %v1304 = vld [vmem:[#allocation2 + $0x38] sm:$0xff]
  %v1305 = vld [vmem:[#allocation2 + $0x40] sm:$0xff]
  %v1306 = vld [vmem:[#allocation2 + $0x48] sm:$0xff]
  %v1307 = vld [vmem:[#allocation2 + $0x50] sm:$0xff]
  %v1308 = vld [vmem:[#allocation2 + $0x58] sm:$0xff]
  %v1309 = vld [vmem:[#allocation2 + $0x60] sm:$0xff]
  %v1310 = vld [vmem:[#allocation2 + $0x68] sm:$0xff]
  %v1311 = vld [vmem:[#allocation2 + $0x70] sm:$0xff]
  %v1312 = vld [vmem:[#allocation2 + $0x78] sm:$0xff]
  %v1313 = vld [vmem:[#allocation2 + $0x80] sm:$0xff]
  %v1314 = vld [vmem:[#allocation2 + $0x88] sm:$0xff]
  %v1315 = vld [vmem:[#allocation2 + $0x90] sm:$0xff]
  %v1316 = vld [vmem:[#allocation2 + $0x98] sm:$0xff]
  %v1317 = vld [vmem:[#allocation2 + $0xa0] sm:$0xff]
  %v1318 = vld [vmem:[#allocation2 + $0xa8] sm:$0xff]
  %v1319 = vld [vmem:[#allocation2 + $0xb0] sm:$0xff]
  %v1320 = vld [vmem:[#allocation2 + $0xb8] sm:$0xff]
  %v1321 = vld [vmem:[#allocation2 + $0xc0] sm:$0xff]
  %v1322 = vld [vmem:[#allocation2 + $0xc8] sm:$0xff]
  %v1323 = vld [vmem:[#allocation2 + $0xd0] sm:$0xff]
  %v1324 = vld [vmem:[#allocation2 + $0xd8] sm:$0xff]
  %v1325 = vld [vmem:[#allocation2 + $0xe0] sm:$0xff]
  %v1326 = vld [vmem:[#allocation2 + $0xe8] sm:$0xff]
  %v1327 = vld [vmem:[#allocation2 + $0xf0] sm:$0xff]
  %v1328 = vld [vmem:[#allocation2 + $0xf8] sm:$0xff]
  %v1329 = vld [vmem:[#allocation2 + $0x100] sm:$0xff]
  %v1330 = vld [vmem:[#allocation2 + $0x108] sm:$0xff]
  %v1331 = vld [vmem:[#allocation2 + $0x110] sm:$0xff]
  %v1332 = vld [vmem:[#allocation2 + $0x118] sm:$0xff]
  %v1335 = vunpack.c.l.b16 %v1295
  %v1336 = vunpack.c.h.b16 %v1295
  %v1337 = vunpack.c.l.b16 %v1296
  %v1338 = vunpack.c.h.b16 %v1296
  %v1339 = vpack.c.b16 %v1337, %v1335
  %v1340 = vpack.c.b16 %v1338, %v1336
  %v1343 = vsel %vm606, %v1340, 0
  %1345 = vmatprep.subr.bf16.mxu0 %v1298
  %1346 = vmatpush1.bf16.msra.mxu0 %v1297
  %1347 = vmatprep.subr.bf16.mxu0 %v1302
  %1348 = vmatpush1.bf16.msra.mxu0 %v1301
  %1349 = vmatprep.subr.bf16.mxu0 %v1306
  %1350 = vmatpush1.bf16.msra.mxu0 %v1305
  %1351 = vmatprep.subr.bf16.mxu0 %v1310
  %1352 = vmatpush1.bf16.msra.mxu0 %v1309
  %1353 = vmatprep.subr.bf16.mxu0 %v1314
  %1354 = vmatpush1.bf16.msra.mxu0 %v1313
  %1355 = vmatprep.subr.bf16.mxu0 %v1318
  %1356 = vmatpush1.bf16.msra.mxu0 %v1317
  %1357 = vmatprep.subr.bf16.mxu0 %v1322
  %1358 = vmatpush1.bf16.msra.mxu0 %v1321
  %1359 = vmatprep.subr.bf16.mxu0 %v1326
  %1360 = vmatpush1.bf16.msra.mxu0 %v1325
  %1361 = vmatprep.subr.bf16.mxu0 %v1330
  %1362 = vmatpush1.bf16.msra.mxu0 %v1329
  %1363 = vmatprep.subr.bf16.mxu0 0
  %1364 = vmatpush1.bf16.msra.mxu0 0
  %1365 = vmatprep.subr.bf16.mxu0 0
  %1366 = vmatpush1.bf16.msra.mxu0 0
  %1367 = vmatprep.subr.bf16.mxu0 0
  %1368 = vmatpush1.bf16.msra.mxu0 0
  %1369 = vmatprep.subr.bf16.mxu0 0
  %1370 = vmatpush1.bf16.msra.mxu0 0
  %1371 = vmatprep.subr.bf16.mxu0 0
  %1372 = vmatpush1.bf16.msra.mxu0 0
  %1373 = vmatprep.subr.bf16.mxu0 0
  %1374 = vmatpush1.bf16.msra.mxu0 0
  %1375 = vmatprep.subr.bf16.mxu0 0
  %1376 = vmatpush1.bf16.msra.mxu0 0
  %1377 = vmatprep.mubr.bf16.mxu0 %v1343
  %1378 = vmatmul.mubr.bf16.gmra.mrb[0].mxu0 %v1339
  %v1379 = vpop.f32.mrb[0].mxu0
  %v1380 = vadd.f32 0.0, %v1379
  %v1381 = vpop.f32.mrb[0].mxu0
  %v1382 = vadd.f32 0.0, %v1381
  %v1383 = vpop.f32.mrb[0].mxu0
  %v1384 = vadd.f32 0.0, %v1383
  %v1385 = vpop.f32.mrb[0].mxu0
  %v1386 = vadd.f32 0.0, %v1385
  %1387 = vdwg.mxu0
  %1388 = vmatprep.subr.bf16.mxu0 %v1300
  %1389 = vmatpush1.bf16.msra.mxu0 %v1299
  %1390 = vmatprep.subr.bf16.mxu0 %v1304
  %1391 = vmatpush1.bf16.msra.mxu0 %v1303
  %1392 = vmatprep.subr.bf16.mxu0 %v1308
  %1393 = vmatpush1.bf16.msra.mxu0 %v1307
  %1394 = vmatprep.subr.bf16.mxu0 %v1312
  %1395 = vmatpush1.bf16.msra.mxu0 %v1311
  %1396 = vmatprep.subr.bf16.mxu0 %v1316
  %1397 = vmatpush1.bf16.msra.mxu0 %v1315
  %1398 = vmatprep.subr.bf16.mxu0 %v1320
  %1399 = vmatpush1.bf16.msra.mxu0 %v1319
  %1400 = vmatprep.subr.bf16.mxu0 %v1324
  %1401 = vmatpush1.bf16.msra.mxu0 %v1323
  %1402 = vmatprep.subr.bf16.mxu0 %v1328
  %1403 = vmatpush1.bf16.msra.mxu0 %v1327
  %1404 = vmatprep.subr.bf16.mxu0 %v1332
  %1405 = vmatpush1.bf16.msra.mxu0 %v1331
  %1406 = vmatprep.subr.bf16.mxu0 0
  %1407 = vmatpush1.bf16.msra.mxu0 0
  %1408 = vmatprep.subr.bf16.mxu0 0
  %1409 = vmatpush1.bf16.msra.mxu0 0
  %1410 = vmatprep.subr.bf16.mxu0 0
  %1411 = vmatpush1.bf16.msra.mxu0 0
  %1412 = vmatprep.subr.bf16.mxu0 0
  %1413 = vmatpush1.bf16.msra.mxu0 0
  %1414 = vmatprep.subr.bf16.mxu0 0
  %1415 = vmatpush1.bf16.msra.mxu0 0
  %1416 = vmatprep.subr.bf16.mxu0 0
  %1417 = vmatpush1.bf16.msra.mxu0 0
  %1418 = vmatprep.subr.bf16.mxu0 0
  %1419 = vmatpush1.bf16.msra.mxu0 0
  %1420 = vmatprep.mubr.bf16.mxu0 %v1343
  %1421 = vmatmul.mubr.bf16.gmra.mrb[0].mxu0 %v1339
  %v1422 = vpop.f32.mrb[0].mxu0
  %v1423 = vadd.f32 0.0, %v1422
  %v1424 = vpop.f32.mrb[0].mxu0
  %v1425 = vadd.f32 0.0, %v1424
  %v1426 = vpop.f32.mrb[0].mxu0
  %v1427 = vadd.f32 0.0, %v1426
  %v1428 = vpop.f32.mrb[0].mxu0
  %v1429 = vadd.f32 0.0, %v1428
  %1430 = vdwg.mxu0
  %v1431 = vld [vmem:[%s6] sm:$0xff]
  %v1432 = vld [vmem:[%s6 + $0x8] sm:$0xff]
  %v1433 = vld [vmem:[%s7] sm:$0xff]
  %v1434 = vld [vmem:[%s7 + $0x8] sm:$0xff]
  %v1435 = vadd.f32 %v1380, %v1382
  %v1436 = vadd.f32 %v1435, %v1423
  %v1437 = vadd.f32 %v1436, %v1425
  %1438 = vadd.xlane.f32.xlu0 %v1437
  %v1439 = vpop.xlane.xlu0 %1438
  %v1440 = vadd.f32 %v1384, %v1386
  %v1441 = vadd.f32 %v1440, %v1427
  %v1442 = vadd.f32 %v1441, %v1429
  %1443 = vadd.xlane.f32.xlu0 %v1442
  %v1444 = vpop.xlane.xlu0 %1443
  %v1445 = vmul.f32 %v1439, %v710
  %v1446 = vmul.f32 %v1444, %v710
  %v1447 = vmul.f32 %v1380, %v1380
  %v1448 = vmul.f32 %v1382, %v1382
  %v1449 = vmul.f32 %v1423, %v1423
  %v1450 = vmul.f32 %v1425, %v1425
  %v1451 = vmul.f32 %v1384, %v1384
  %v1452 = vmul.f32 %v1386, %v1386
  %v1453 = vmul.f32 %v1427, %v1427
  %v1454 = vmul.f32 %v1429, %v1429
  %v1455 = vadd.f32 %v1447, %v1448
  %v1456 = vadd.f32 %v1455, %v1449
  %v1457 = vadd.f32 %v1456, %v1450
  %1458 = vadd.xlane.f32.xlu0 %v1457
  %v1459 = vpop.xlane.xlu0 %1458
  %v1460 = vadd.f32 %v1451, %v1452
  %v1461 = vadd.f32 %v1460, %v1453
  %v1462 = vadd.f32 %v1461, %v1454
  %1463 = vadd.xlane.f32.xlu0 %v1462
  %v1464 = vpop.xlane.xlu0 %1463
  %v1465 = vmul.f32 %v1459, %v710
  %v1466 = vmul.f32 %v1464, %v710
  %v1467 = vmul.f32 %v1445, %v1445
  %v1468 = vmul.f32 %v1446, %v1446
  %v1469 = vsub.f32 %v1465, %v1467
  %v1470 = vsub.f32 %v1466, %v1468
  %v1471 = vadd.f32 %v1469, 1e-05
  %v1472 = vadd.f32 %v1470, 1e-05
  %v1473 = vrsqrt.pop %v1471
  %v1474 = vrsqrt.pop %v1472
  %v1475 = vmul.f32 %v1431, %v1473
  %v1476 = vmul.f32 %v1432, %v1474
  %v1477 = vmul.f32 %v1445, %v1475
  %v1478 = vmul.f32 %v1446, %v1476
  %v1479 = vsub.f32 %v1433, %v1477
  %v1480 = vsub.f32 %v1434, %v1478
  %1482 = vset.pattern.permute.xlu0 0
  %1483 = vperm.xlu0 %1482, %v1475
  %v1484 = vpop.permute.xlu0 %1483
  %1487 = vset.pattern.permute.xlu0 0
  %1488 = vperm.xlu0 %1487, %v1476
  %v1489 = vpop.permute.xlu0 %1488
  %v1491 = vmul.f32 %v1380, %v1484
  %v1492 = vmul.f32 %v1382, %v1484
  %v1493 = vmul.f32 %v1423, %v1484
  %v1494 = vmul.f32 %v1425, %v1484
  %v1495 = vmul.f32 %v1384, %v1489
  %v1496 = vmul.f32 %v1386, %v1489
  %v1497 = vmul.f32 %v1427, %v1489
  %v1498 = vmul.f32 %v1429, %v1489
  %1500 = vset.pattern.permute.xlu0 0
  %1501 = vperm.xlu0 %1500, %v1479
  %v1502 = vpop.permute.xlu0 %1501
  %1505 = vset.pattern.permute.xlu0 0
  %1506 = vperm.xlu0 %1505, %v1480
  %v1507 = vpop.permute.xlu0 %1506
  %v1509 = vadd.f32 %v1491, %v1502
  %v1510 = vadd.f32 %v1492, %v1502
  %v1511 = vadd.f32 %v1493, %v1502
  %v1512 = vadd.f32 %v1494, %v1502
  %v1513 = vadd.f32 %v1495, %v1507
  %v1514 = vadd.f32 %v1496, %v1507
  %v1515 = vadd.f32 %v1497, %v1507
  %v1516 = vadd.f32 %v1498, %v1507
  %v1517 = vadd.f32 %v1509, %v30
  %v1518 = vadd.f32 %v1510, %v31
  %v1519 = vadd.f32 %v1511, %v32
  %v1520 = vadd.f32 %v1512, %v33
  %v1521 = vadd.f32 %v1513, %v34
  %v1522 = vadd.f32 %v1514, %v35
  %v1523 = vadd.f32 %v1515, %v36
  %v1524 = vadd.f32 %v1516, %v37
  %v1525 = vmax.f32 %v1517, 0.0
  %v1526 = vmax.f32 %v1518, 0.0
  %v1527 = vmax.f32 %v1519, 0.0
  %v1528 = vmax.f32 %v1520, 0.0
  %v1529 = vmax.f32 %v1521, 0.0
  %v1530 = vmax.f32 %v1522, 0.0
  %v1531 = vmax.f32 %v1523, 0.0
  %v1532 = vmax.f32 %v1524, 0.0
  %1533 = vst [vmem:[%s8] sm:$0xff] %v1525
  %1534 = vst [vmem:[%s8 + $0x8] sm:$0xff] %v1526
  %1535 = vst [vmem:[%s8 + $0x10] sm:$0xff] %v1527
  %1536 = vst [vmem:[%s8 + $0x18] sm:$0xff] %v1528
  %1537 = vst [vmem:[%s8 + $0x20] sm:$0xff] %v1529
  %1538 = vst [vmem:[%s8 + $0x28] sm:$0xff] %v1530
  %1539 = vst [vmem:[%s8 + $0x30] sm:$0xff] %v1531
  %1540 = vst [vmem:[%s8 + $0x38] sm:$0xff] %v1532
  // Predicated region
  $region34: #{block_forward.1} parent=0 // pred_check
    _
  $region35: #{block_forward.1} parent=0 // pred_check_branch
    %1542 = sbr.rel (0) target = $region37
  $region36: #{block_forward.1} parent=0 // pred_region
    _
  $region37: #{block_forward.1} parent=0 // pred_fallthru
    _
  // Predicated region
  $region38: #{block_forward.1} parent=0 // pred_check
    _
  $region39: #{block_forward.1} parent=0 // pred_check_branch
    %1544 = sbr.rel (0) target = $region41
  $region40: #{block_forward.1} parent=0 // pred_region
    _
  $region41: #{block_forward.1} parent=0 // pred_fallthru
    _

</llo_original>
